<compile_context>
chip_gen: v5e
topology: v5e:2x2
jax: 0.10.0
libtpu: 0.0.40
codegen_flags: <defaults>
</compile_context>

<pallas_src>
import functools
import math

import jax
import jax.numpy as jnp
from jax.experimental import pallas as pl
from jax.experimental.pallas import tpu as pltpu

_MASK_VALUE = -1e9  # finite (not -inf) so fully-masked rows never produce NaN


# ------------------------------ small helpers -------------------------------
def _rmsnorm(x, w, eps):
    # x: (tq, H) fp32, w: (1, H) fp32
    var = jnp.mean(x * x, axis=-1, keepdims=True)
    return x * jax.lax.rsqrt(var + eps) * (1.0 + w)


def _gelu_tanh(x):
    c = math.sqrt(2.0 / math.pi)
    return 0.5 * x * (1.0 + jnp.tanh(c * (x + 0.044715 * x * x * x)))


# ------------------------- kernel bodies (Pallas) ----------------------------
def _qkv_rope_kernel(x_ref, cos_ref, sin_ref, ln_ref, wqkv_ref,
                     q_ref, k_ref, v_ref, *, head_dim, eps, compute_dtype):
    D = head_dim
    x = x_ref[0].astype(jnp.float32)                          # (tq, H)
    h = _rmsnorm(x, ln_ref[...], eps).astype(compute_dtype)   # MXU operand
    qkv = jnp.dot(h, wqkv_ref[...],
                  preferred_element_type=jnp.float32)         # (tq, 3D) fp32
    q, k, v = qkv[:, :D], qkv[:, D:2 * D], qkv[:, 2 * D:]

    cos = cos_ref[0].astype(jnp.float32)                      # (tq, D)
    sin = sin_ref[0].astype(jnp.float32)                      # first half pre-negated
    # rotate_half(t) * sin == roll(t, D//2, lanes) * sin_signed ; sin_signed is
    # pre-negated on the XLA side, so no iota/where here.
    q = q * cos + pltpu.roll(q, D // 2, axis=1) * sin
    k = k * cos + pltpu.roll(k, D // 2, axis=1) * sin
    q = q * (1.0 / math.sqrt(D))                              # fold softmax scale into q

    q_ref[0] = q.astype(q_ref.dtype)
    k_ref[0] = k.astype(k_ref.dtype)
    v_ref[0] = v.astype(v_ref.dtype)


def _flash_oproj_kernel(*args, tq, tkv, causal, approx_recip):
    if causal:
        (q_ref, k_ref, v_ref, res_ref, wo_ref, o_ref,
         m_scr, l_scr, acc_scr) = args
        mask_ref = None
    else:
        (q_ref, k_ref, v_ref, mask_ref, res_ref, wo_ref, o_ref,
         m_scr, l_scr, acc_scr) = args

    i = pl.program_id(1)
    ki = pl.program_id(2)

    @pl.when(ki == 0)
    def _():
        m_scr[...] = jnp.full(m_scr.shape, -jnp.inf, jnp.float32)
        l_scr[...] = jnp.zeros(l_scr.shape, jnp.float32)
        acc_scr[...] = jnp.zeros(acc_scr.shape, jnp.float32)

    def _update():
        q = q_ref[0]                                          # (tq, D), already * 1/sqrt(D)
        k = k_ref[0]                                          # (tkv, D)
        s = jax.lax.dot_general(q, k, (((1,), (1,)), ((), ())),
                                preferred_element_type=jnp.float32)   # (tq, tkv)
        if causal:
            row = i * tq + jax.lax.broadcasted_iota(jnp.int32, (tq, tkv), 0)
            col = ki * tkv + jax.lax.broadcasted_iota(jnp.int32, (tq, tkv), 1)
            s = s + jnp.where(col <= row, 0.0, _MASK_VALUE)
        else:
            s = s + mask_ref[0].astype(jnp.float32)

        m_prev = m_scr[...]
        m_new = jnp.maximum(m_prev, jnp.max(s, axis=-1, keepdims=True))
        alpha = jnp.exp(m_prev - m_new)
        # TODO(synk): on v6e/v7x a bf16 exp here doubles EUP throughput if the
        # bundle shows the EUP saturating; keep fp32 for accuracy headroom.
        p = jnp.exp(s - m_new)
        l_scr[...] = alpha * l_scr[...] + jnp.sum(p, axis=-1, keepdims=True)
        acc_scr[...] = alpha * acc_scr[...] + jnp.dot(
            p.astype(v_ref.dtype), v_ref[0], preferred_element_type=jnp.float32)
        m_scr[...] = m_new

    if causal:
        # Skip KV tiles strictly above the diagonal (fully masked).
        @pl.when(ki * tkv < (i + 1) * tq)
        def _():
            _update()
    else:
        _update()

    @pl.when(ki == pl.num_programs(2) - 1)
    def _():
        if approx_recip:
            inv = pl.reciprocal(l_scr[...], approx=True)      # EUP slot (bf16 path)
        else:
            inv = 1.0 / l_scr[...]                            # exact (fp32 path)
        attn = (acc_scr[...] * inv).astype(wo_ref.dtype)      # (tq, D)
        o = jnp.dot(attn, wo_ref[...], preferred_element_type=jnp.float32)  # (tq, H)
        o_ref[0] = (res_ref[0].astype(jnp.float32) + o).astype(o_ref.dtype)


def _mlp_kernel(x_ref, ln_ref, wg_ref, wu_ref, wd_ref, o_ref, *, eps, compute_dtype):
    # Full MLP (module-as-written: down(up(gelu(gate(x))) * gelu(gate(x)))) plus
    # post-attention RMSNorm and the residual add, all resident in VMEM.
    x = x_ref[0].astype(jnp.float32)                          # (tm, H)
    h = _rmsnorm(x, ln_ref[...], eps).astype(compute_dtype)
    g = _gelu_tanh(jnp.dot(h, wg_ref[...],
                           preferred_element_type=jnp.float32))   # (tm, I) fp32
    g_cd = g.astype(compute_dtype)
    j = jnp.dot(g_cd, wu_ref[...], preferred_element_type=jnp.float32)
    z = (j * g_cd.astype(jnp.float32)).astype(compute_dtype)
    y = jnp.dot(z, wd_ref[...], preferred_element_type=jnp.float32)   # (tm, H)
    o_ref[0] = (x + y).astype(o_ref.dtype)


# ------------------------------ pallas wrappers ------------------------------
def _qkv_rope(x, cos, sin, ln1, wqkv, *, head_dim, eps, tq, compute_dtype, vmem_limit):
    B, S, H = x.shape
    D = head_dim
    kernel = functools.partial(_qkv_rope_kernel, head_dim=D, eps=eps,
                               compute_dtype=compute_dtype)
    spec_sd = pl.BlockSpec((1, tq, D), lambda b, i: (b, i, 0))
    return pl.pallas_call(
        kernel,
        out_shape=tuple(jax.ShapeDtypeStruct((B, S, D), compute_dtype)
                        for _ in range(3)),
        grid=(B, S // tq),
        in_specs=[
            pl.BlockSpec((1, tq, H), lambda b, i: (b, i, 0)),   # hidden row tile
            spec_sd,                                            # cos (compute dtype)
            spec_sd,                                            # signed sin
            pl.BlockSpec((1, H), lambda b, i: (0, 0)),          # ln1 (grid-invariant)
            # Fused (H, 3*D) qkv weight, grid-invariant so it is DMA'd once.
            # TODO(synk): tile the 3*D output axis once heads > 1.
            pl.BlockSpec((H, 3 * D), lambda b, i: (0, 0)),
        ],
        out_specs=(spec_sd, spec_sd, spec_sd),
        compiler_params=pltpu.CompilerParams(
            dimension_semantics=("parallel", "parallel"),
            vmem_limit_bytes=vmem_limit),
    )(x, cos, sin, ln1, wqkv)


def _flash_attention_oproj(q, k, v, residual, wo, mask, *, tq, tkv, causal,
                           approx_recip, out_dtype, vmem_limit):
    B, S, D = q.shape
    H = wo.shape[1]
    kernel = functools.partial(_flash_oproj_kernel, tq=tq, tkv=tkv,
                               causal=causal, approx_recip=approx_recip)
    in_specs = [
        pl.BlockSpec((1, tq, D), lambda b, i, j: (b, i, 0)),    # q
        pl.BlockSpec((1, tkv, D), lambda b, i, j: (b, j, 0)),   # k
        pl.BlockSpec((1, tkv, D), lambda b, i, j: (b, j, 0)),   # v
    ]
    inputs = [q, k, v]
    if not causal:
        # Explicit-mask fallback: streamed as (tq, tkv) tiles in compute dtype
        # (half the bytes of fp32); default path synthesizes causal in-kernel.
        in_specs.append(pl.BlockSpec((1, tq, tkv), lambda b, i, j: (b, i, j)))
        inputs.append(mask)
    in_specs += [
        pl.BlockSpec((1, tq, H), lambda b, i, j: (b, i, 0)),    # residual (kv-invariant)
        pl.BlockSpec((D, H), lambda b, i, j: (0, 0)),           # wo (grid-invariant)
    ]
    inputs += [residual, wo]
    return pl.pallas_call(
        kernel,
        out_shape=jax.ShapeDtypeStruct((B, S, H), out_dtype),
        grid=(B, S // tq, S // tkv),
        in_specs=in_specs,
        out_specs=pl.BlockSpec((1, tq, H), lambda b, i, j: (b, i, 0)),
        scratch_shapes=[pltpu.VMEM((tq, 1), jnp.float32),       # running max m
                        pltpu.VMEM((tq, 1), jnp.float32),       # running denom l
                        pltpu.VMEM((tq, D), jnp.float32)],      # fp32 accumulator
        compiler_params=pltpu.CompilerParams(
            dimension_semantics=("parallel", "parallel", "arbitrary"),
            vmem_limit_bytes=vmem_limit),
    )(*inputs)


def _mlp_fused(x1, ln2, wg, wu, wd, *, eps, tm, compute_dtype, out_dtype, vmem_limit):
    B, S, H = x1.shape
    Ki, I = wg.shape
    kernel = functools.partial(_mlp_kernel, eps=eps, compute_dtype=compute_dtype)
    return pl.pallas_call(
        kernel,
        out_shape=jax.ShapeDtypeStruct((B, S, H), out_dtype),
        grid=(B, S // tm),
        in_specs=[
            pl.BlockSpec((1, tm, H), lambda b, i: (b, i, 0)),
            pl.BlockSpec((1, H), lambda b, i: (0, 0)),
            # Grid-invariant weights: DMA'd once per call.  For real (huge-inter)
            # shapes these would be streamed as (K, tn) slabs instead — see TODO
            # at the top; the module's inter==hidden constraint keeps them small.
            pl.BlockSpec((Ki, I), lambda b, i: (0, 0)),
            pl.BlockSpec(wu.shape, lambda b, i: (0, 0)),
            pl.BlockSpec(wd.shape, lambda b, i: (0, 0)),
        ],
        out_specs=pl.BlockSpec((1, tm, H), lambda b, i: (b, i, 0)),
        compiler_params=pltpu.CompilerParams(
            dimension_semantics=("parallel", "parallel"),
            vmem_limit_bytes=vmem_limit),
    )(x1, ln2, wg, wu, wd)


# ----------------------------- decoder layer glue ----------------------------
def rope_cos_sin(position_ids, head_dim, base, dtype=jnp.float32):
    """cos and SIGN-FOLDED sin (first half pre-negated) so the kernel can use
    pltpu.roll without an iota/where."""
    inv_freq = 1.0 / (base ** (jnp.arange(0, head_dim, 2, dtype=jnp.float32) / head_dim))
    freqs = position_ids[:, :, None].astype(jnp.float32) * inv_freq[None, None, :]
    cos = jnp.cos(jnp.concatenate([freqs, freqs], axis=-1))         # (B, S, D)
    s = jnp.sin(freqs)
    sin_signed = jnp.concatenate([-s, s], axis=-1)                  # (B, S, D)
    return cos.astype(dtype), sin_signed.astype(dtype)


def prepare_params(params, compute_dtype):
    """One-off (load-time) weight fuse + cast so every forward streams bf16
    weights straight from HBM instead of re-casting them per call."""
    cd = compute_dtype
    return dict(
        wqkv=jnp.concatenate([params["q_w"], params["k_w"], params["v_w"]],
                             axis=1).astype(cd),
        wo=params["o_w"].astype(cd),
        wg=params["gate_w"].astype(cd),
        wu=params["up_w"].astype(cd),
        wd=params["down_w"].astype(cd),
        ln1=params["ln1_w"].astype(jnp.float32),
        ln2=params["ln2_w"].astype(jnp.float32),
    )


def gemma_decoder_layer(hidden_states, attention_mask, position_ids, prepared, cfg,
                        *, compute_dtype=jnp.bfloat16, causal_mask=True,
                        tq=256, tkv=256, tm=256,
                        vmem_limit_bytes=64 * 1024 * 1024):
    """One GemmaDecoderLayer forward (fresh KV cache) via 3 fused Pallas kernels.

    causal_mask=True (default): the standard causal additive mask is synthesized
    in-kernel and fully-masked KV tiles are skipped.  Set causal_mask=False to
    stream the provided attention_mask (arbitrary additive bias) instead.
    Tile defaults (256) suit v6e/v7x; raise tq/tm to 512 on v5e/v6e if desired.
    """
    B, S, H = hidden_states.shape
    D = cfg["head_dim"]
    inter = cfg["intermediate_size"]
    eps = cfg["rms_norm_eps"]
    assert cfg["num_attention_heads"] == 1 and cfg["num_key_value_heads"] == 1, (
        "module's view/broadcast quirks require a single head")
    assert inter == H, "module's MLP (as written) requires intermediate == hidden"

    tq = min(tq, S)
    tkv = min(tkv, S)
    tm = min(tm, S)
    assert S % tq == 0 and S % tkv == 0 and S % tm == 0

    cd = compute_dtype
    approx_recip = jnp.dtype(cd) != jnp.dtype(jnp.float32)
    cos, sin = rope_cos_sin(position_ids, D, cfg["rope_theta"], dtype=cd)

    mask = None
    if not causal_mask:
        assert attention_mask is not None
        mask = attention_mask.astype(cd)

    # 1) input RMSNorm + fused QKV projection + RoPE (1/sqrt(D) folded into q)
    q, k, v = _qkv_rope(hidden_states, cos, sin, prepared["ln1"], prepared["wqkv"],
                        head_dim=D, eps=eps, tq=tq, compute_dtype=cd,
                        vmem_limit=vmem_limit_bytes)
    # 2) flash attention (+ in-kernel causal mask / tile skip) + o_proj + residual
    x1 = _flash_attention_oproj(q, k, v, hidden_states, prepared["wo"], mask,
                                tq=tq, tkv=tkv, causal=causal_mask,
                                approx_recip=approx_recip, out_dtype=cd,
                                vmem_limit=vmem_limit_bytes)
    # 3) post-attn RMSNorm + gate + gelu + up*gate + down + residual
    out = _mlp_fused(x1, prepared["ln2"], prepared["wg"], prepared["wu"],
                     prepared["wd"], eps=eps, tm=tm, compute_dtype=cd,
                     out_dtype=hidden_states.dtype, vmem_limit=vmem_limit_bytes)
    return out


# ----------------------------- params / reference ----------------------------
def init_layer_params(key, cfg):
    H, D, inter = cfg["hidden_size"], cfg["head_dim"], cfg["intermediate_size"]
    ks = jax.random.split(key, 9)

    def w(k, shape):
        return 0.02 * jax.random.normal(k, shape, jnp.float32)

    # Linear weights stored pre-transposed to (in_features, out_features).
    return dict(
        q_w=w(ks[0], (H, D)), k_w=w(ks[1], (H, D)), v_w=w(ks[2], (H, D)),
        o_w=w(ks[3], (D, H)),
        gate_w=w(ks[4], (H, inter)), up_w=w(ks[5], (H, inter)),
        down_w=w(ks[6], (inter, H)),
        ln1_w=0.1 * jax.random.normal(ks[7], (1, H), jnp.float32),
        ln2_w=0.1 * jax.random.normal(ks[8], (1, H), jnp.float32),
    )


def reference_decoder_layer(x, mask, position_ids, p, cfg, compute_dtype=jnp.float32):
    """Pure-JAX reference.  With compute_dtype=float32 it is the exact module
    math; otherwise it mirrors the kernels' operand / residual-stream casts."""
    D, eps = cfg["head_dim"], cfg["rms_norm_eps"]
    cd = compute_dtype

    inv_freq = 1.0 / (cfg["rope_theta"] ** (jnp.arange(0, D, 2, dtype=jnp.float32) / D))
    freqs = position_ids[:, :, None].astype(jnp.float32) * inv_freq[None, None, :]
    emb = jnp.concatenate([freqs, freqs], axis=-1)
    cos = jnp.cos(emb).astype(cd).astype(jnp.float32)
    sin = jnp.sin(emb).astype(cd).astype(jnp.float32)

    def rms(v, w):
        var = jnp.mean(v * v, axis=-1, keepdims=True)
        return v * jax.lax.rsqrt(var + eps) * (1.0 + w)

    def rot_half(t):
        return jnp.concatenate([-t[..., D // 2:], t[..., :D // 2]], axis=-1)

    def mm(a, b):
        return jnp.matmul(a.astype(cd), b.astype(cd),
                          preferred_element_type=jnp.float32)

    x0 = x.astype(jnp.float32)
    h = rms(x0, p["ln1_w"])
    q, k, v = mm(h, p["q_w"]), mm(h, p["k_w"]), mm(h, p["v_w"])
    q = q * cos + rot_half(q) * sin
    k = k * cos + rot_half(k) * sin
    q = q * (1.0 / math.sqrt(D))
    q, k, v = q.astype(cd), k.astype(cd), v.astype(cd)
    scores = jnp.einsum("bqd,bkd->bqk", q, k,
                        preferred_element_type=jnp.float32) + mask.astype(jnp.float32)
    a = jax.nn.softmax(scores, axis=-1)
    attn = jnp.einsum("bqk,bkd->bqd", a.astype(cd), v,
                      preferred_element_type=jnp.float32)
    x1 = (x0 + mm(attn, p["o_w"])).astype(cd)        # residual stream in compute dtype
    x1f = x1.astype(jnp.float32)
    h2 = rms(x1f, p["ln2_w"])
    g = _gelu_tanh(mm(h2, p["gate_w"]))
    g_cd = g.astype(cd)
    j = mm(g_cd, p["up_w"])
    z = j * g_cd.astype(jnp.float32)
    return x1f + mm(z.astype(cd), p["down_w"])


# ----------------------------------- main ------------------------------------
if __name__ == "__main__":
    B, S = 2, 512
    cfg = dict(
        hidden_size=256,
        intermediate_size=256,    # must equal hidden_size (module's MLP as written)
        num_attention_heads=1,    # required by the module's view/broadcast quirks
        num_key_value_heads=1,
        head_dim=128,
        rope_theta=10000.0,
        rms_norm_eps=1e-6,
    )

    key = jax.random.PRNGKey(0)
    k_params, k_x = jax.random.split(key)
    params = init_layer_params(k_params, cfg)

    hidden_states = jax.random.normal(k_x, (B, S, cfg["hidden_size"]), jnp.float32)
    position_ids = jnp.broadcast_to(jnp.arange(S, dtype=jnp.int32)[None, :], (B, S))
    row = jnp.arange(S)[:, None]
    col = jnp.arange(S)[None, :]
    causal = jnp.where(col <= row, 0.0, _MASK_VALUE).astype(jnp.float32)
    attention_mask = jnp.broadcast_to(causal[None], (B, S, S))

    # 1) fp32 compute path, in-kernel causal mask: faithful to the module math.
    prep_f32 = prepare_params(params, jnp.float32)
    out_f32 = gemma_decoder_layer(hidden_states, attention_mask, position_ids,
                                  prep_f32, cfg, compute_dtype=jnp.float32,
                                  causal_mask=True)
    out_f32 = jax.block_until_ready(out_f32)
    ref_f32 = reference_decoder_layer(hidden_states, attention_mask, position_ids,
                                      params, cfg, compute_dtype=jnp.float32)
    err_f32 = float(jnp.max(jnp.abs(out_f32 - ref_f32)))
    assert out_f32.shape == (B, S, cfg["hidden_size"])
    assert bool(jnp.all(jnp.isfinite(out_f32)))
    assert err_f32 < 3e-3, f"fp32 path mismatch vs reference: {err_f32}"

    # 2) bf16 MXU-operand path (production setting), in-kernel causal mask,
    #    checked against a cast-matched reference.
    prep_bf16 = prepare_params(params, jnp.bfloat16)
    ref_bf16 = reference_decoder_layer(hidden_states, attention_mask, position_ids,
                                       params, cfg, compute_dtype=jnp.bfloat16)
    out_bf16 = gemma_decoder_layer(hidden_states, attention_mask, position_ids,
                                   prep_bf16, cfg, compute_dtype=jnp.bfloat16,
                                   causal_mask=True)
    out_bf16 = jax.block_until_ready(out_bf16)
    err_bf16 = float(jnp.max(jnp.abs(out_bf16 - ref_bf16)))
    assert bool(jnp.all(jnp.isfinite(out_bf16)))
    assert err_bf16 < 8e-2, f"bf16 causal path mismatch: {err_bf16}"

    # 3) explicit-mask fallback path (mask streamed as bf16 tiles).
    out_mask = gemma_decoder_layer(hidden_states, attention_mask, position_ids,
                                   prep_bf16, cfg, compute_dtype=jnp.bfloat16,
                                   causal_mask=False)
    out_mask = jax.block_until_ready(out_mask)
    err_mask = float(jnp.max(jnp.abs(out_mask - ref_bf16)))
    assert bool(jnp.all(jnp.isfinite(out_mask)))
    assert err_mask < 8e-2, f"bf16 explicit-mask path mismatch: {err_mask}"

    print("KERNEL_OK")
</pallas_src>

<mosaic_0001>
module attributes {stable_mosaic.version = 11 : i64} {
  func.func @_qkv_rope_kernel(%arg0: i32, %arg1: i32, %arg2: memref<1x256x256xf32, #tpu.memory_space<vmem>>, %arg3: memref<1x256x128xf32, #tpu.memory_space<vmem>>, %arg4: memref<1x256x128xf32, #tpu.memory_space<vmem>>, %arg5: memref<1x256xf32, #tpu.memory_space<vmem>>, %arg6: memref<256x384xf32, #tpu.memory_space<vmem>>, %arg7: memref<1x256x128xf32, #tpu.memory_space<vmem>>, %arg8: memref<1x256x128xf32, #tpu.memory_space<vmem>>, %arg9: memref<1x256x128xf32, #tpu.memory_space<vmem>>) attributes {dimension_semantics = [#tpu.dimension_semantics<parallel>, #tpu.dimension_semantics<parallel>], iteration_bounds = array<i64: 2, 2>, scalar_prefetch = 0 : i64, scratch_operands = 0 : i64, tpu.core_type = #tpu.core_type<tc>, window_params = [{transform_indices = @transform_0, window_bounds = array<i64: 1, 256, 256>}, {transform_indices = @transform_1, window_bounds = array<i64: 1, 256, 128>}, {transform_indices = @transform_2, window_bounds = array<i64: 1, 256, 128>}, {pipeline_mode = #tpu.pipeline_mode<synchronous>, transform_indices = @transform_3, window_bounds = array<i64: 1, 256>}, {pipeline_mode = #tpu.pipeline_mode<synchronous>, transform_indices = @transform_4, window_bounds = array<i64: 256, 384>}, {transform_indices = @transform_5, window_bounds = array<i64: 1, 256, 128>}, {transform_indices = @transform_6, window_bounds = array<i64: 1, 256, 128>}, {transform_indices = @transform_7, window_bounds = array<i64: 1, 256, 128>}]} {
    %c0 = arith.constant 0 : index
    %c0_0 = arith.constant 0 : index
    %c0_1 = arith.constant 0 : index
    %0 = vector.load %arg2[%c0, %c0_0, %c0_1] : memref<1x256x256xf32, #tpu.memory_space<vmem>>, vector<1x256x256xf32>
    %1 = vector.shape_cast %0 : vector<1x256x256xf32> to vector<256x256xf32>
    %c0_2 = arith.constant 0 : index
    %c0_3 = arith.constant 0 : index
    %2 = vector.load %arg5[%c0_2, %c0_3] : memref<1x256xf32, #tpu.memory_space<vmem>>, vector<1x256xf32>
    %3 = arith.mulf %1, %1 : vector<256x256xf32>
    %cst = arith.constant dense<0.000000e+00> : vector<256xf32>
    %4 = vector.multi_reduction <add>, %3, %cst [1] : vector<256x256xf32> to vector<256xf32>
    %5 = vector.shape_cast %4 : vector<256xf32> to vector<256x1xf32>
    %cst_4 = arith.constant 2.560000e+02 : f32
    %6 = vector.broadcast %cst_4 : f32 to vector<256x1xf32>
    %7 = arith.divf %5, %6 : vector<256x1xf32>
    %cst_5 = arith.constant 9.99999997E-7 : f32
    %8 = vector.broadcast %cst_5 : f32 to vector<256x1xf32>
    %9 = arith.addf %7, %8 : vector<256x1xf32>
    %10 = math.rsqrt %9 : vector<256x1xf32>
    %11 = vector.broadcast %10 : vector<256x1xf32> to vector<256x256xf32>
    %12 = arith.mulf %1, %11 : vector<256x256xf32>
    %cst_6 = arith.constant 1.000000e+00 : f32
    %13 = vector.broadcast %cst_6 : f32 to vector<1x256xf32>
    %14 = arith.addf %13, %2 : vector<1x256xf32>
    %15 = vector.broadcast %14 : vector<1x256xf32> to vector<256x256xf32>
    %16 = arith.mulf %12, %15 : vector<256x256xf32>
    %c0_7 = arith.constant 0 : index
    %c0_8 = arith.constant 0 : index
    %17 = vector.load %arg6[%c0_7, %c0_8] : memref<256x384xf32, #tpu.memory_space<vmem>>, vector<256x384xf32>
    %cst_9 = arith.constant dense<0.000000e+00> : vector<256x384xf32>
    %18 = tpu.matmul %16, %17, %cst_9 {dimension_numbers = #tpu.dot_dimension_numbers<[1], [0], [0], [1], [0, 0, 1, 1], [], []>} : vector<256x256xf32>, vector<256x384xf32>, vector<256x384xf32> -> vector<256x384xf32>
    %19 = vector.extract_strided_slice %18 {offsets = [0, 0], sizes = [256, 128], strides = [1, 1]} : vector<256x384xf32> to vector<256x128xf32>
    %20 = vector.extract_strided_slice %18 {offsets = [0, 128], sizes = [256, 128], strides = [1, 1]} : vector<256x384xf32> to vector<256x128xf32>
    %21 = vector.extract_strided_slice %18 {offsets = [0, 256], sizes = [256, 128], strides = [1, 1]} : vector<256x384xf32> to vector<256x128xf32>
    %c0_10 = arith.constant 0 : index
    %c0_11 = arith.constant 0 : index
    %c0_12 = arith.constant 0 : index
    %22 = vector.load %arg3[%c0_10, %c0_11, %c0_12] : memref<1x256x128xf32, #tpu.memory_space<vmem>>, vector<1x256x128xf32>
    %23 = vector.shape_cast %22 : vector<1x256x128xf32> to vector<256x128xf32>
    %c0_13 = arith.constant 0 : index
    %c0_14 = arith.constant 0 : index
    %c0_15 = arith.constant 0 : index
    %24 = vector.load %arg4[%c0_13, %c0_14, %c0_15] : memref<1x256x128xf32, #tpu.memory_space<vmem>>, vector<1x256x128xf32>
    %25 = vector.shape_cast %24 : vector<1x256x128xf32> to vector<256x128xf32>
    %26 = arith.mulf %19, %23 : vector<256x128xf32>
    %c64_i32 = arith.constant 64 : i32
    %27 = tpu.dynamic_rotate %19 by %c64_i32 dim 1 : vector<256x128xf32>, i32 -> vector<256x128xf32>
    %28 = arith.mulf %27, %25 : vector<256x128xf32>
    %29 = arith.addf %26, %28 : vector<256x128xf32>
    %30 = arith.mulf %20, %23 : vector<256x128xf32>
    %c64_i32_16 = arith.constant 64 : i32
    %31 = tpu.dynamic_rotate %20 by %c64_i32_16 dim 1 : vector<256x128xf32>, i32 -> vector<256x128xf32>
    %32 = arith.mulf %31, %25 : vector<256x128xf32>
    %33 = arith.addf %30, %32 : vector<256x128xf32>
    %cst_17 = arith.constant 0.0883883461 : f32
    %34 = vector.broadcast %cst_17 : f32 to vector<256x128xf32>
    %35 = arith.mulf %29, %34 : vector<256x128xf32>
    %c0_18 = arith.constant 0 : index
    %c0_19 = arith.constant 0 : index
    %c0_20 = arith.constant 0 : index
    %36 = vector.load %arg7[%c0_18, %c0_19, %c0_20] : memref<1x256x128xf32, #tpu.memory_space<vmem>>, vector<1x256x128xf32>
    %37 = vector.shape_cast %36 : vector<1x256x128xf32> to vector<256x128xf32>
    %38 = vector.shape_cast %35 : vector<256x128xf32> to vector<1x256x128xf32>
    tpu.vector_store %arg7[%c0_18, %c0_19, %c0_20], %38 {strides = array<i32>} : memref<1x256x128xf32, #tpu.memory_space<vmem>>, vector<1x256x128xf32>,
    %c0_21 = arith.constant 0 : index
    %c0_22 = arith.constant 0 : index
    %c0_23 = arith.constant 0 : index
    %39 = vector.load %arg8[%c0_21, %c0_22, %c0_23] : memref<1x256x128xf32, #tpu.memory_space<vmem>>, vector<1x256x128xf32>
    %40 = vector.shape_cast %39 : vector<1x256x128xf32> to vector<256x128xf32>
    %41 = vector.shape_cast %33 : vector<256x128xf32> to vector<1x256x128xf32>
    tpu.vector_store %arg8[%c0_21, %c0_22, %c0_23], %41 {strides = array<i32>} : memref<1x256x128xf32, #tpu.memory_space<vmem>>, vector<1x256x128xf32>,
    %c0_24 = arith.constant 0 : index
    %c0_25 = arith.constant 0 : index
    %c0_26 = arith.constant 0 : index
    %42 = vector.load %arg9[%c0_24, %c0_25, %c0_26] : memref<1x256x128xf32, #tpu.memory_space<vmem>>, vector<1x256x128xf32>
    %43 = vector.shape_cast %42 : vector<1x256x128xf32> to vector<256x128xf32>
    %44 = vector.shape_cast %21 : vector<256x128xf32> to vector<1x256x128xf32>
    tpu.vector_store %arg9[%c0_24, %c0_25, %c0_26], %44 {strides = array<i32>} : memref<1x256x128xf32, #tpu.memory_space<vmem>>, vector<1x256x128xf32>,
    return
  }
  func.func @transform_0(%arg0: i32, %arg1: i32) -> (i32, i32, i32) {
    %c0_i32 = arith.constant 0 : i32
    %c0_i32_0 = arith.constant 0 : i32
    return %arg0, %arg1, %c0_i32 : i32, i32, i32
  }
  func.func @transform_1(%arg0: i32, %arg1: i32) -> (i32, i32, i32) {
    %c0_i32 = arith.constant 0 : i32
    %c0_i32_0 = arith.constant 0 : i32
    return %arg0, %arg1, %c0_i32 : i32, i32, i32
  }
  func.func @transform_2(%arg0: i32, %arg1: i32) -> (i32, i32, i32) {
    %c0_i32 = arith.constant 0 : i32
    %c0_i32_0 = arith.constant 0 : i32
    return %arg0, %arg1, %c0_i32 : i32, i32, i32
  }
  func.func @transform_3(%arg0: i32, %arg1: i32) -> (i32, i32) {
    %c0_i32 = arith.constant 0 : i32
    %c0_i32_0 = arith.constant 0 : i32
    %c0_i32_1 = arith.constant 0 : i32
    return %c0_i32, %c0_i32_0 : i32, i32
  }
  func.func @transform_4(%arg0: i32, %arg1: i32) -> (i32, i32) {
    %c0_i32 = arith.constant 0 : i32
    %c0_i32_0 = arith.constant 0 : i32
    %c0_i32_1 = arith.constant 0 : i32
    return %c0_i32, %c0_i32_0 : i32, i32
  }
  func.func @transform_5(%arg0: i32, %arg1: i32) -> (i32, i32, i32) {
    %c0_i32 = arith.constant 0 : i32
    %c0_i32_0 = arith.constant 0 : i32
    return %arg0, %arg1, %c0_i32 : i32, i32, i32
  }
  func.func @transform_6(%arg0: i32, %arg1: i32) -> (i32, i32, i32) {
    %c0_i32 = arith.constant 0 : i32
    %c0_i32_0 = arith.constant 0 : i32
    return %arg0, %arg1, %c0_i32 : i32, i32, i32
  }
  func.func @transform_7(%arg0: i32, %arg1: i32) -> (i32, i32, i32) {
    %c0_i32 = arith.constant 0 : i32
    %c0_i32_0 = arith.constant 0 : i32
    return %arg0, %arg1, %c0_i32 : i32, i32, i32
  }
}

</mosaic_0001>

<llo_original>
// kernel: tpu_custom_call.1
$region0: #{tpu_custom_call.1}
  #allocation0 [shape = 'u32[]', space=smem, size = 0x4, offset = 0x4, fixed_abs, tag = 'smem constant byte address 0x4 - core index']
  #allocation1 [shape = 'u32[72,128]{1,0:T(1,128)}', space=vmem, size = 0x9000, scoped, tag = 'internal scratch']
  %s0 = inlined_call_operand.hbm [shape: f32[2,512,256], index: 0, kind: input, shape index: {}]
  %s1 = inlined_call_operand.hbm [shape: f32[2,512,128], index: 1, kind: input, shape index: {}]
  %s2 = inlined_call_operand.hbm [shape: f32[2,512,128], index: 2, kind: input, shape index: {}]
  %s3 = inlined_call_operand.vmem [shape: f32[1,256], index: 3, kind: input, shape index: {}]
  %s4 = inlined_call_operand.hbm [shape: f32[256,384], index: 4, kind: input, shape index: {}]
  %s5 = inlined_call_operand.hbm [shape: f32[2,512,128], index: 5, kind: output, shape index: {0}]
  %s6 = inlined_call_operand.hbm [shape: f32[2,512,128], index: 6, kind: output, shape index: {1}]
  %s7 = inlined_call_operand.hbm [shape: f32[2,512,128], index: 7, kind: output, shape index: {2}]
  %8 = xla_tuple %s5, %s6, %s7
  %s9 = sld [smem:[#allocation0]]
  $region85: #{tpu_custom_call.1} parent=0
    _
  %s11 = ssub.s32 1, %s9
  %s12 = scalar_select 0, %s11, %s9
  $region1: #{tpu_custom_call.1} parent=0
    #allocation2 [shape = 'u8[524288]{0}', space=vmem, size = 0x80000, scoped, tag = 'input window, operand 0']
    #allocation3 [shape = 's32[2]{0}', space=sflag, size = 0x8, scoped, tag = 'scoped memory for tpu_custom_call.1']
    #allocation4 [shape = 's32[2]{0}', space=sflag, size = 0x8, scoped, tag = 'scoped memory for tpu_custom_call.1']
    #allocation5 [shape = 'u8[262144]{0}', space=vmem, size = 0x40000, scoped, tag = 'input window, operand 1']
    #allocation6 [shape = 's32[2]{0}', space=sflag, size = 0x8, scoped, tag = 'scoped memory for tpu_custom_call.1']
    #allocation7 [shape = 'u8[262144]{0}', space=vmem, size = 0x40000, scoped, tag = 'input window, operand 2']
    #allocation8 [shape = 'u8[393216]{0}', space=vmem, size = 0x60000, scoped, tag = 'input window, operand 4, single buffered']
    #allocation9 [shape = 's32[1]{0}', space=sflag, size = 0x4, scoped, tag = 'scoped memory for tpu_custom_call.1']
    #allocation10 [shape = 'u8[262144]{0}', space=vmem, size = 0x40000, scoped, tag = 'output window, operand 0']
    #allocation11 [shape = 'u8[262144]{0}', space=vmem, size = 0x40000, scoped, tag = 'output window, operand 1']
    #allocation12 [shape = 's32[2]{0}', space=sflag, size = 0x8, scoped, tag = 'scoped memory for tpu_custom_call.1']
    #allocation13 [shape = 'u8[262144]{0}', space=vmem, size = 0x40000, scoped, tag = 'output window, operand 2']
    %13 = vsyncpa [#allocation3], 0
    %s14 = scalar_lea.sflag [#allocation3], 1
    %15 = vsyncpa %s14, 0
    %16 = vsyncpa [#allocation6], 0
    %s17 = scalar_lea.sflag [#allocation6], 1
    %18 = vsyncpa %s17, 0
    %19 = vsyncpa [#allocation9], 0
    %20 = vsyncpa [#allocation4], 0
    %s21 = scalar_lea.sflag [#allocation4], 1
    %22 = vsyncpa %s21, 0
    %23 = vsyncpa [#allocation12], 0
    %s24 = scalar_lea.sflag [#allocation12], 1
    %25 = vsyncpa %s24, 0
    loop: start=0, step=1, limit=6
    $region2: #{tpu_custom_call.1} parent=1 // loop_pre_header
      _
    $region3: #{tpu_custom_call.1} parent=1 // loop_header
      %s27 = sphi 0, %s31
      %p28 = scmp.ge.s32.totalorder %s27, 6
      %s34 = sphi 0, %s46
      %s35 = sphi 0, %s42
      %s36 = sphi 0, %s34
      %s37 = sphi 0, %s35
      %s38 = sphi 0, %s36
      %s39 = sphi 0, %s37
      %s51 = sphi 0, %s53
      %s54 = sphi 0, %s51
      %s55 = sphi 0, %s54
      %s71 = sphi 0, %s55
      %s79 = sphi 0, %s81
      %s82 = sphi 0, %s79
      %s83 = sphi 0, %s82
      %s99 = sphi 0, %s83
      %s107 = sphi 0, %s109
      %s110 = sphi 0, %s107
      %s111 = sphi 0, %s110
      %s127 = sphi 0, %s111
      %s131 = sphi 0, %s131
      %s133 = sphi 0, %s131
      %s134 = sphi 0, %s133
      %s148 = sphi 0, %s134
      %s152 = sphi 0, %s152
      %s154 = sphi 0, %s152
      %s155 = sphi 0, %s154
      %s169 = sphi 0, %s155
      %s177 = sphi 0, %s179
      %s180 = sphi 0, %s177
      %s181 = sphi 0, %s180
      %s197 = sphi 0, %s181
      %s205 = sphi 0, %s207
      %s208 = sphi 0, %s205
      %s209 = sphi 0, %s208
      %s225 = sphi 0, %s209
      %s233 = sphi 0, %s235
      %s236 = sphi 0, %s233
      %s237 = sphi 0, %s236
      %s253 = sphi 0, %s237
    $region4: #{tpu_custom_call.1} parent=1 // loop_header_branch
      %30 = sbr.rel (%p28) target = $region8
    $region5: #{tpu_custom_call.1} parent=1 // loop_body
      %s32 = ssub.s32 %s27, 1
      %s33 = ssub.s32 %s27, 2
      %s40 = sadd.s32 1, %s35
      %p41 = scmp.ge.s32.totalorder %s40, 2
      %s42 = scalar_select %p41, 0, %s40
      %s43 = sadd.s32 1, %s34
      %s44 = scalar_select %p41, %s43, %s34
      %p45 = scmp.ge.s32.totalorder %s44, 2
      %s46 = scalar_select %p45, 0, %s44
      %s47 = ssub.s32 %s34, %s46
      %s48 = ssub.s32 %s35, %s42
      %s49 = sor.u32 %s47, %s48
      %p50 = scmp.eq.s32.totalorder %s49, 0
      %s52 = sadd.s32 %s51, 1
      %s53 = scalar_select %p50, %s51, %s52
      %p56 = pneg %p50
      %p57 = scmp.eq.s32.totalorder %s27, 3
      %p58 = por %p56, %p57
      %p59 = scmp.ne.s32.totalorder %s51, %s54
      %p60 = scmp.eq.s32.totalorder %s27, 0
      %p61 = por %p59, %p60
      %p62 = scmp.ne.s32.totalorder %s51, %s54
      %p63 = scmp.eq.s32.totalorder %s32, 3
      %p64 = por %p62, %p63
      %p65 = scmp.ne.s32.totalorder %s54, %s55
      %p66 = scmp.eq.s32.totalorder %s32, 0
      %p67 = por %p65, %p66
      %p68 = scmp.ne.s32.totalorder %s54, %s55
      %p69 = scmp.eq.s32.totalorder %s33, 3
      %p70 = por %p68, %p69
      %p72 = scmp.ne.s32.totalorder %s55, %s71
      %p73 = scmp.eq.s32.totalorder %s33, 0
      %p74 = por %p72, %p73
      %s75 = ssub.s32 %s34, %s46
      %s76 = ssub.s32 %s35, %s42
      %s77 = sor.u32 %s75, %s76
      %p78 = scmp.eq.s32.totalorder %s77, 0
      %s80 = sadd.s32 %s79, 1
      %s81 = scalar_select %p78, %s79, %s80
      %p84 = pneg %p78
      %p85 = scmp.eq.s32.totalorder %s27, 3
      %p86 = por %p84, %p85
      %p87 = scmp.ne.s32.totalorder %s79, %s82
      %p88 = scmp.eq.s32.totalorder %s27, 0
      %p89 = por %p87, %p88
      %p90 = scmp.ne.s32.totalorder %s79, %s82
      %p91 = scmp.eq.s32.totalorder %s32, 3
      %p92 = por %p90, %p91
      %p93 = scmp.ne.s32.totalorder %s82, %s83
      %p94 = scmp.eq.s32.totalorder %s32, 0
      %p95 = por %p93, %p94
      %p96 = scmp.ne.s32.totalorder %s82, %s83
      %p97 = scmp.eq.s32.totalorder %s33, 3
      %p98 = por %p96, %p97
      %p100 = scmp.ne.s32.totalorder %s83, %s99
      %p101 = scmp.eq.s32.totalorder %s33, 0
      %p102 = por %p100, %p101
      %s103 = ssub.s32 %s34, %s46
      %s104 = ssub.s32 %s35, %s42
      %s105 = sor.u32 %s103, %s104
      %p106 = scmp.eq.s32.totalorder %s105, 0
      %s108 = sadd.s32 %s107, 1
      %s109 = scalar_select %p106, %s107, %s108
      %p112 = pneg %p106
      %p113 = scmp.eq.s32.totalorder %s27, 3
      %p114 = por %p112, %p113
      %p115 = scmp.ne.s32.totalorder %s107, %s110
      %p116 = scmp.eq.s32.totalorder %s27, 0
      %p117 = por %p115, %p116
      %p118 = scmp.ne.s32.totalorder %s107, %s110
      %p119 = scmp.eq.s32.totalorder %s32, 3
      %p120 = por %p118, %p119
      %p121 = scmp.ne.s32.totalorder %s110, %s111
      %p122 = scmp.eq.s32.totalorder %s32, 0
      %p123 = por %p121, %p122
      %p124 = scmp.ne.s32.totalorder %s110, %s111
      %p125 = scmp.eq.s32.totalorder %s33, 3
      %p126 = por %p124, %p125
      %p128 = scmp.ne.s32.totalorder %s111, %s127
      %p129 = scmp.eq.s32.totalorder %s33, 0
      %p130 = por %p128, %p129
      %s132 = sadd.s32 %s131, 1
      %p135 = scmp.eq.s32.totalorder %s27, 3
      %p136 = scmp.ne.s32.totalorder %s131, %s133
      %p137 = scmp.eq.s32.totalorder %s27, 0
      %p138 = por %p136, %p137
      %p139 = scmp.ne.s32.totalorder %s131, %s133
      %p140 = scmp.eq.s32.totalorder %s32, 3
      %p141 = por %p139, %p140
      %p142 = scmp.ne.s32.totalorder %s133, %s134
      %p143 = scmp.eq.s32.totalorder %s32, 0
      %p144 = por %p142, %p143
      %p145 = scmp.ne.s32.totalorder %s133, %s134
      %p146 = scmp.eq.s32.totalorder %s33, 3
      %p147 = por %p145, %p146
      %p149 = scmp.ne.s32.totalorder %s134, %s148
      %p150 = scmp.eq.s32.totalorder %s33, 0
      %p151 = por %p149, %p150
      %s153 = sadd.s32 %s152, 1
      %p156 = scmp.eq.s32.totalorder %s27, 3
      %p157 = scmp.ne.s32.totalorder %s152, %s154
      %p158 = scmp.eq.s32.totalorder %s27, 0
      %p159 = por %p157, %p158
      %p160 = scmp.ne.s32.totalorder %s152, %s154
      %p161 = scmp.eq.s32.totalorder %s32, 3
      %p162 = por %p160, %p161
      %p163 = scmp.ne.s32.totalorder %s154, %s155
      %p164 = scmp.eq.s32.totalorder %s32, 0
      %p165 = por %p163, %p164
      %p166 = scmp.ne.s32.totalorder %s154, %s155
      %p167 = scmp.eq.s32.totalorder %s33, 3
      %p168 = por %p166, %p167
      %p170 = scmp.ne.s32.totalorder %s155, %s169
      %p171 = scmp.eq.s32.totalorder %s33, 0
      %p172 = por %p170, %p171
      %s173 = ssub.s32 %s34, %s46
      %s174 = ssub.s32 %s35, %s42
      %s175 = sor.u32 %s173, %s174
      %p176 = scmp.eq.s32.totalorder %s175, 0
      %s178 = sadd.s32 %s177, 1
      %s179 = scalar_select %p176, %s177, %s178
      %p182 = pneg %p176
      %p183 = scmp.eq.s32.totalorder %s27, 3
      %p184 = por %p182, %p183
      %p185 = scmp.ne.s32.totalorder %s177, %s180
      %p186 = scmp.eq.s32.totalorder %s27, 0
      %p187 = por %p185, %p186
      %p188 = scmp.ne.s32.totalorder %s177, %s180
      %p189 = scmp.eq.s32.totalorder %s32, 3
      %p190 = por %p188, %p189
      %p191 = scmp.ne.s32.totalorder %s180, %s181
      %p192 = scmp.eq.s32.totalorder %s32, 0
      %p193 = por %p191, %p192
      %p194 = scmp.ne.s32.totalorder %s180, %s181
      %p195 = scmp.eq.s32.totalorder %s33, 3
      %p196 = por %p194, %p195
      %p198 = scmp.ne.s32.totalorder %s181, %s197
      %p199 = scmp.eq.s32.totalorder %s33, 0
      %p200 = por %p198, %p199
      %s201 = ssub.s32 %s34, %s46
      %s202 = ssub.s32 %s35, %s42
      %s203 = sor.u32 %s201, %s202
      %p204 = scmp.eq.s32.totalorder %s203, 0
      %s206 = sadd.s32 %s205, 1
      %s207 = scalar_select %p204, %s205, %s206
      %p210 = pneg %p204
      %p211 = scmp.eq.s32.totalorder %s27, 3
      %p212 = por %p210, %p211
      %p213 = scmp.ne.s32.totalorder %s205, %s208
      %p214 = scmp.eq.s32.totalorder %s27, 0
      %p215 = por %p213, %p214
      %p216 = scmp.ne.s32.totalorder %s205, %s208
      %p217 = scmp.eq.s32.totalorder %s32, 3
      %p218 = por %p216, %p217
      %p219 = scmp.ne.s32.totalorder %s208, %s209
      %p220 = scmp.eq.s32.totalorder %s32, 0
      %p221 = por %p219, %p220
      %p222 = scmp.ne.s32.totalorder %s208, %s209
      %p223 = scmp.eq.s32.totalorder %s33, 3
      %p224 = por %p222, %p223
      %p226 = scmp.ne.s32.totalorder %s209, %s225
      %p227 = scmp.eq.s32.totalorder %s33, 0
      %p228 = por %p226, %p227
      %s229 = ssub.s32 %s34, %s46
      %s230 = ssub.s32 %s35, %s42
      %s231 = sor.u32 %s229, %s230
      %p232 = scmp.eq.s32.totalorder %s231, 0
      %s234 = sadd.s32 %s233, 1
      %s235 = scalar_select %p232, %s233, %s234
      %p238 = pneg %p232
      %p239 = scmp.eq.s32.totalorder %s27, 3
      %p240 = por %p238, %p239
      %p241 = scmp.ne.s32.totalorder %s233, %s236
      %p242 = scmp.eq.s32.totalorder %s27, 0
      %p243 = por %p241, %p242
      %p244 = scmp.ne.s32.totalorder %s233, %s236
      %p245 = scmp.eq.s32.totalorder %s32, 3
      %p246 = por %p244, %p245
      %p247 = scmp.ne.s32.totalorder %s236, %s237
      %p248 = scmp.eq.s32.totalorder %s32, 0
      %p249 = por %p247, %p248
      %p250 = scmp.ne.s32.totalorder %s236, %s237
      %p251 = scmp.eq.s32.totalorder %s33, 3
      %p252 = por %p250, %p251
      %p254 = scmp.ne.s32.totalorder %s237, %s253
      %p255 = scmp.eq.s32.totalorder %s33, 0
      %p256 = por %p254, %p255
      %p257 = scmp.le.s32.totalorder 1, %s27
      %p258 = scmp.lt.s32.totalorder %s27, 5
      %p259 = pnand %p257, %p258
      %p260 = pneg %p259
      // Predicated region
      $region9: #{tpu_custom_call.1} parent=5 // pred_check
        _
      $region10: #{tpu_custom_call.1} parent=5 // pred_check_branch
        %262 = sbr.rel (%p259) target = $region12
      $region11: #{tpu_custom_call.1} parent=5 // pred_region
        %s263 = ssub.s32 %s27, 1
        // Predicated region
        $region13: #{tpu_custom_call.1} parent=11 // pred_check
          %p264 = pneg %p144
        $region14: #{tpu_custom_call.1} parent=11 // pred_check_branch
          %266 = sbr.rel (%p264) target = $region16
        $region15: #{tpu_custom_call.1} parent=11 // pred_region
          _
        $region16: #{tpu_custom_call.1} parent=11 // pred_fallthru
          _
        // Predicated region
        $region17: #{tpu_custom_call.1} parent=11 // pred_check
          %p267 = pneg %p165
        $region18: #{tpu_custom_call.1} parent=11 // pred_check_branch
          %269 = sbr.rel (%p267) target = $region20
        $region19: #{tpu_custom_call.1} parent=11 // pred_region
          %271 = vsyncadd [#allocation9], 0
          %s272 = sshll.u32 %s4, 4
          %s273 = int_to_ptr.hbm [resolvable:$true] %s272
          %s274 = sshll.u32 [#allocation8], 4
          %s275 = int_to_ptr.vmem [resolvable:$true] %s274
          %280 = dma.hbm_to_vmem [thread:$0]  %s273, 12288, %s275, [#allocation9], 384, 384, 24
        $region20: #{tpu_custom_call.1} parent=11 // pred_fallthru
          _
      $region12: #{tpu_custom_call.1} parent=5 // pred_fallthru
        _
      %p281 = scmp.lt.s32.totalorder %s27, 4
      // Predicated region
      $region21: #{tpu_custom_call.1} parent=5 // pred_check
        %p282 = pneg %p281
      $region22: #{tpu_custom_call.1} parent=5 // pred_check_branch
        %284 = sbr.rel (%p282) target = $region24
      $region23: #{tpu_custom_call.1} parent=5 // pred_region
        // Predicated region
        $region25: #{tpu_custom_call.1} parent=23 // pred_check
          %p285 = pneg %p61
        $region26: #{tpu_custom_call.1} parent=23 // pred_check_branch
          %287 = sbr.rel (%p285) target = $region28
        $region27: #{tpu_custom_call.1} parent=23 // pred_region
          %s288 = sand.u32 %s51, 1
          %s289 = scalar_lea.sflag [#allocation3], %s288
          %s290 = sand.u32 %s51, 1
          %s291 = smul.addr %s290, 512
          %s292 = scalar_lea.vmem [#allocation2], %s291
          %s293 = smul.u32 32, %s35
          %295 = vsyncadd %s289, 0
          %s296 = smul.addr %s293, 2
          %s297 = smul.addr %s34, 128
          %s298 = sadd.s32 %s296, %s297
          %s299 = smul.addr %s298, 8
          %s300 = scalar_lea.hbm %s0, %s299
          %s301 = sshll.u32 %s300, 4
          %s302 = int_to_ptr.hbm [resolvable:$true] %s301
          %s303 = sshll.u32 %s292, 4
          %s304 = int_to_ptr.vmem [resolvable:$true] %s303
          %309 = dma.hbm_to_vmem [thread:$0]  %s302, 8192, %s304, %s289, 256, 256, 16
        $region28: #{tpu_custom_call.1} parent=23 // pred_fallthru
          _
        // Predicated region
        $region29: #{tpu_custom_call.1} parent=23 // pred_check
          %p310 = pneg %p89
        $region30: #{tpu_custom_call.1} parent=23 // pred_check_branch
          %312 = sbr.rel (%p310) target = $region32
        $region31: #{tpu_custom_call.1} parent=23 // pred_region
          %s313 = sand.u32 %s27, 1
          %s314 = scalar_lea.sflag [#allocation6], %s313
          %s315 = sand.u32 %s79, 1
          %s316 = smul.addr %s315, 256
          %s317 = scalar_lea.vmem [#allocation5], %s316
          %s318 = smul.u32 32, %s35
          %320 = vsyncadd %s314, 0
          %s321 = smul.addr %s34, 64
          %s322 = sadd.s32 %s318, %s321
          %s323 = smul.addr %s322, 8
          %s324 = scalar_lea.hbm %s1, %s323
          %s325 = sshll.u32 %s324, 4
          %s326 = int_to_ptr.hbm [resolvable:$true] %s325
          %s327 = sshll.u32 %s317, 4
          %s328 = int_to_ptr.vmem [resolvable:$true] %s327
          %333 = dma.hbm_to_vmem [thread:$0]  %s326, 4096, %s328, %s314, 128, 128, 8
        $region32: #{tpu_custom_call.1} parent=23 // pred_fallthru
          _
        // Predicated region
        $region33: #{tpu_custom_call.1} parent=23 // pred_check
          %p334 = pneg %p117
        $region34: #{tpu_custom_call.1} parent=23 // pred_check_branch
          %336 = sbr.rel (%p334) target = $region36
        $region35: #{tpu_custom_call.1} parent=23 // pred_region
          %s337 = sand.u32 %s27, 1
          %s338 = scalar_lea.sflag [#allocation6], %s337
          %s339 = sand.u32 %s107, 1
          %s340 = smul.addr %s339, 256
          %s341 = scalar_lea.vmem [#allocation7], %s340
          %s342 = smul.u32 32, %s35
          %344 = vsyncadd %s338, 0
          %s345 = smul.addr %s34, 64
          %s346 = sadd.s32 %s342, %s345
          %s347 = smul.addr %s346, 8
          %s348 = scalar_lea.hbm %s2, %s347
          %s349 = sshll.u32 %s348, 4
          %s350 = int_to_ptr.hbm [resolvable:$true] %s349
          %s351 = sshll.u32 %s341, 4
          %s352 = int_to_ptr.vmem [resolvable:$true] %s351
          %357 = dma.hbm_to_vmem [thread:$0]  %s350, 4096, %s352, %s338, 128, 128, 8
        $region36: #{tpu_custom_call.1} parent=23 // pred_fallthru
          _
      $region24: #{tpu_custom_call.1} parent=5 // pred_fallthru
        _
      %p358 = scmp.le.s32.totalorder 1, %s27
      %p359 = scmp.lt.s32.totalorder %s27, 5
      %p360 = pnand %p358, %p359
      %p361 = pneg %p360
      // Predicated region
      $region37: #{tpu_custom_call.1} parent=5 // pred_check
        _
      $region38: #{tpu_custom_call.1} parent=5 // pred_check_branch
        %363 = sbr.rel (%p360) target = $region40
      $region39: #{tpu_custom_call.1} parent=5 // pred_region
        %s364 = ssub.s32 %s27, 1
        %s365 = sand.u32 %s54, 1
        %s366 = scalar_lea.sflag [#allocation3], %s365
        %s367 = sand.u32 %s54, 1
        %s368 = smul.addr %s367, 512
        %s369 = scalar_lea.vmem [#allocation2], %s368
        // Predicated region
        $region41: #{tpu_custom_call.1} parent=39 // pred_check
          %p370 = pneg %p67
        $region42: #{tpu_custom_call.1} parent=39 // pred_check_branch
          %372 = sbr.rel (%p370) target = $region44
        $region43: #{tpu_custom_call.1} parent=39 // pred_region
          %374 = dma.done %s366, 8192
        $region44: #{tpu_custom_call.1} parent=39 // pred_fallthru
          _
        %s375 = sand.u32 %s32, 1
        %s376 = scalar_lea.sflag [#allocation6], %s375
        %s377 = sand.u32 %s82, 1
        %s378 = smul.addr %s377, 256
        %s379 = scalar_lea.vmem [#allocation5], %s378
        // Predicated region
        $region45: #{tpu_custom_call.1} parent=39 // pred_check
          %p380 = pneg %p95
        $region46: #{tpu_custom_call.1} parent=39 // pred_check_branch
          %382 = sbr.rel (%p380) target = $region48
        $region47: #{tpu_custom_call.1} parent=39 // pred_region
          %384 = dma.done %s376, 4096
        $region48: #{tpu_custom_call.1} parent=39 // pred_fallthru
          _
        %s385 = sand.u32 %s32, 1
        %s386 = scalar_lea.sflag [#allocation6], %s385
        %s387 = sand.u32 %s110, 1
        %s388 = smul.addr %s387, 256
        %s389 = scalar_lea.vmem [#allocation7], %s388
        // Predicated region
        $region49: #{tpu_custom_call.1} parent=39 // pred_check
          %p390 = pneg %p123
        $region50: #{tpu_custom_call.1} parent=39 // pred_check_branch
          %392 = sbr.rel (%p390) target = $region52
        $region51: #{tpu_custom_call.1} parent=39 // pred_region
          %394 = dma.done %s386, 4096
        $region52: #{tpu_custom_call.1} parent=39 // pred_fallthru
          _
        // Predicated region
        $region53: #{tpu_custom_call.1} parent=39 // pred_check
          %p395 = pneg %p165
        $region54: #{tpu_custom_call.1} parent=39 // pred_check_branch
          %397 = sbr.rel (%p395) target = $region56
        $region55: #{tpu_custom_call.1} parent=39 // pred_region
          %399 = dma.done [#allocation9], 12288
        $region56: #{tpu_custom_call.1} parent=39 // pred_fallthru
          _
        %s400 = sand.u32 %s54, 1
        %s401 = scalar_lea.sflag [#allocation3], %s400
        %s402 = sand.u32 %s54, 1
        %s403 = smul.addr %s402, 512
        %s404 = scalar_lea.vmem [#allocation2], %s403
        %p405 = pneg %p67
        %p406 = pneg %p64
        %s407 = sand.u32 %s32, 1
        %s408 = scalar_lea.sflag [#allocation6], %s407
        %s409 = sand.u32 %s82, 1
        %s410 = smul.addr %s409, 256
        %s411 = scalar_lea.vmem [#allocation5], %s410
        %p412 = pneg %p95
        %p413 = pneg %p92
        %s414 = sand.u32 %s32, 1
        %s415 = scalar_lea.sflag [#allocation6], %s414
        %s416 = sand.u32 %s110, 1
        %s417 = smul.addr %s416, 256
        %s418 = scalar_lea.vmem [#allocation7], %s417
        %p419 = pneg %p123
        %p420 = pneg %p120
        %p421 = pneg %p144
        %p422 = pneg %p141
        %p423 = pneg %p165
        %p424 = pneg %p162
        %p425 = pneg %p193
        %p426 = pneg %p190
        %s427 = sand.u32 %s180, 1
        %s428 = scalar_lea.sflag [#allocation4], %s427
        %s429 = sand.u32 %s180, 1
        %s430 = smul.addr %s429, 256
        %s431 = scalar_lea.vmem [#allocation10], %s430
        %p432 = pneg %p221
        %p433 = pneg %p218
        %s434 = sand.u32 %s32, 1
        %s435 = scalar_lea.sflag [#allocation12], %s434
        %s436 = sand.u32 %s208, 1
        %s437 = smul.addr %s436, 256
        %s438 = scalar_lea.vmem [#allocation11], %s437
        %p439 = pneg %p249
        %p440 = pneg %p246
        %s441 = sand.u32 %s32, 1
        %s442 = scalar_lea.sflag [#allocation12], %s441
        %s443 = sand.u32 %s236, 1
        %s444 = smul.addr %s443, 256
        %s445 = scalar_lea.vmem [#allocation13], %s444
        %s446 = smul.u32 32, %s37
        %s447 = smul.u32 32, %s37
        %s448 = smul.u32 32, %s37
        %s449 = smul.u32 32, %s37
        %s450 = smul.u32 32, %s37
        %s451 = smul.u32 32, %s37
        %v452 = vld [vmem:[%s369] sm:$0xff]
        %v453 = vld [vmem:[%s369 + $0x8] sm:$0xff]
        %v454 = vld [vmem:[%s369 + $0x10] sm:$0xff]
        %v455 = vld [vmem:[%s369 + $0x18] sm:$0xff]
        %v456 = vld [vmem:[%s369 + $0x20] sm:$0xff]
        %v457 = vld [vmem:[%s369 + $0x28] sm:$0xff]
        %v458 = vld [vmem:[%s369 + $0x30] sm:$0xff]
        %v459 = vld [vmem:[%s369 + $0x38] sm:$0xff]
        %v460 = vld [vmem:[%s369 + $0x40] sm:$0xff]
        %v461 = vld [vmem:[%s369 + $0x48] sm:$0xff]
        %v462 = vld [vmem:[%s369 + $0x50] sm:$0xff]
        %v463 = vld [vmem:[%s369 + $0x58] sm:$0xff]
        %v464 = vld [vmem:[%s369 + $0x60] sm:$0xff]
        %v465 = vld [vmem:[%s369 + $0x68] sm:$0xff]
        %v466 = vld [vmem:[%s369 + $0x70] sm:$0xff]
        %v467 = vld [vmem:[%s369 + $0x78] sm:$0xff]
        %v468 = vld [vmem:[%s369 + $0x80] sm:$0xff]
        %v469 = vld [vmem:[%s369 + $0x88] sm:$0xff]
        %v470 = vld [vmem:[%s369 + $0x90] sm:$0xff]
        %v471 = vld [vmem:[%s369 + $0x98] sm:$0xff]
        %v472 = vld [vmem:[%s369 + $0xa0] sm:$0xff]
        %v473 = vld [vmem:[%s369 + $0xa8] sm:$0xff]
        %v474 = vld [vmem:[%s369 + $0xb0] sm:$0xff]
        %v475 = vld [vmem:[%s369 + $0xb8] sm:$0xff]
        %v476 = vld [vmem:[%s369 + $0xc0] sm:$0xff]
        %v477 = vld [vmem:[%s369 + $0xc8] sm:$0xff]
        %v478 = vld [vmem:[%s369 + $0xd0] sm:$0xff]
        %v479 = vld [vmem:[%s369 + $0xd8] sm:$0xff]
        %v480 = vld [vmem:[%s369 + $0xe0] sm:$0xff]
        %v481 = vld [vmem:[%s369 + $0xe8] sm:$0xff]
        %v482 = vld [vmem:[%s369 + $0xf0] sm:$0xff]
        %v483 = vld [vmem:[%s369 + $0xf8] sm:$0xff]
        %v484 = vld [vmem:[%s369 + $0x100] sm:$0xff]
        %v485 = vld [vmem:[%s369 + $0x108] sm:$0xff]
        %v486 = vld [vmem:[%s369 + $0x110] sm:$0xff]
        %v487 = vld [vmem:[%s369 + $0x118] sm:$0xff]
        %v488 = vld [vmem:[%s369 + $0x120] sm:$0xff]
        %v489 = vld [vmem:[%s369 + $0x128] sm:$0xff]
        %v490 = vld [vmem:[%s369 + $0x130] sm:$0xff]
        %v491 = vld [vmem:[%s369 + $0x138] sm:$0xff]
        %v492 = vld [vmem:[%s369 + $0x140] sm:$0xff]
        %v493 = vld [vmem:[%s369 + $0x148] sm:$0xff]
        %v494 = vld [vmem:[%s369 + $0x150] sm:$0xff]
        %v495 = vld [vmem:[%s369 + $0x158] sm:$0xff]
        %v496 = vld [vmem:[%s369 + $0x160] sm:$0xff]
        %v497 = vld [vmem:[%s369 + $0x168] sm:$0xff]
        %v498 = vld [vmem:[%s369 + $0x170] sm:$0xff]
        %v499 = vld [vmem:[%s369 + $0x178] sm:$0xff]
        %v500 = vld [vmem:[%s369 + $0x180] sm:$0xff]
        %v501 = vld [vmem:[%s369 + $0x188] sm:$0xff]
        %v502 = vld [vmem:[%s369 + $0x190] sm:$0xff]
        %v503 = vld [vmem:[%s369 + $0x198] sm:$0xff]
        %v504 = vld [vmem:[%s369 + $0x1a0] sm:$0xff]
        %v505 = vld [vmem:[%s369 + $0x1a8] sm:$0xff]
        %v506 = vld [vmem:[%s369 + $0x1b0] sm:$0xff]
        %v507 = vld [vmem:[%s369 + $0x1b8] sm:$0xff]
        %v508 = vld [vmem:[%s369 + $0x1c0] sm:$0xff]
        %v509 = vld [vmem:[%s369 + $0x1c8] sm:$0xff]
        %v510 = vld [vmem:[%s369 + $0x1d0] sm:$0xff]
        %v511 = vld [vmem:[%s369 + $0x1d8] sm:$0xff]
        %v512 = vld [vmem:[%s369 + $0x1e0] sm:$0xff]
        %v513 = vld [vmem:[%s369 + $0x1e8] sm:$0xff]
        %v514 = vld [vmem:[%s369 + $0x1f0] sm:$0xff]
        %v515 = vld [vmem:[%s369 + $0x1f8] sm:$0xff]
        %v516 = vld [vmem:[%s3] sm:$0x3]
        %v517 = vmul.f32 %v452, %v452
        %v518 = vmul.f32 %v453, %v453
        %v519 = vmul.f32 %v454, %v454
        %v520 = vmul.f32 %v455, %v455
        %v521 = vmul.f32 %v456, %v456
        %v522 = vmul.f32 %v457, %v457
        %v523 = vmul.f32 %v458, %v458
        %v524 = vmul.f32 %v459, %v459
        %v525 = vmul.f32 %v460, %v460
        %v526 = vmul.f32 %v461, %v461
        %v527 = vmul.f32 %v462, %v462
        %v528 = vmul.f32 %v463, %v463
        %v529 = vmul.f32 %v464, %v464
        %v530 = vmul.f32 %v465, %v465
        %v531 = vmul.f32 %v466, %v466
        %v532 = vmul.f32 %v467, %v467
        %v533 = vmul.f32 %v468, %v468
        %v534 = vmul.f32 %v469, %v469
        %v535 = vmul.f32 %v470, %v470
        %v536 = vmul.f32 %v471, %v471
        %v537 = vmul.f32 %v472, %v472
        %v538 = vmul.f32 %v473, %v473
        %v539 = vmul.f32 %v474, %v474
        %v540 = vmul.f32 %v475, %v475
        %v541 = vmul.f32 %v476, %v476
        %v542 = vmul.f32 %v477, %v477
        %v543 = vmul.f32 %v478, %v478
        %v544 = vmul.f32 %v479, %v479
        %v545 = vmul.f32 %v480, %v480
        %v546 = vmul.f32 %v481, %v481
        %v547 = vmul.f32 %v482, %v482
        %v548 = vmul.f32 %v483, %v483
        %v549 = vmul.f32 %v484, %v484
        %v550 = vmul.f32 %v485, %v485
        %v551 = vmul.f32 %v486, %v486
        %v552 = vmul.f32 %v487, %v487
        %v553 = vmul.f32 %v488, %v488
        %v554 = vmul.f32 %v489, %v489
        %v555 = vmul.f32 %v490, %v490
        %v556 = vmul.f32 %v491, %v491
        %v557 = vmul.f32 %v492, %v492
        %v558 = vmul.f32 %v493, %v493
        %v559 = vmul.f32 %v494, %v494
        %v560 = vmul.f32 %v495, %v495
        %v561 = vmul.f32 %v496, %v496
        %v562 = vmul.f32 %v497, %v497
        %v563 = vmul.f32 %v498, %v498
        %v564 = vmul.f32 %v499, %v499
        %v565 = vmul.f32 %v500, %v500
        %v566 = vmul.f32 %v501, %v501
        %v567 = vmul.f32 %v502, %v502
        %v568 = vmul.f32 %v503, %v503
        %v569 = vmul.f32 %v504, %v504
        %v570 = vmul.f32 %v505, %v505
        %v571 = vmul.f32 %v506, %v506
        %v572 = vmul.f32 %v507, %v507
        %v573 = vmul.f32 %v508, %v508
        %v574 = vmul.f32 %v509, %v509
        %v575 = vmul.f32 %v510, %v510
        %v576 = vmul.f32 %v511, %v511
        %v577 = vmul.f32 %v512, %v512
        %v578 = vmul.f32 %v513, %v513
        %v579 = vmul.f32 %v514, %v514
        %v580 = vmul.f32 %v515, %v515
        %v581 = vadd.f32 %v517, %v518
        %582 = vadd.xlane.f32.xlu0 %v581
        %v583 = vpop.xlane.xlu0 %582
        %v584 = vadd.f32 %v519, %v520
        %585 = vadd.xlane.f32.xlu0 %v584
        %v586 = vpop.xlane.xlu0 %585
        %v587 = vadd.f32 %v521, %v522
        %588 = vadd.xlane.f32.xlu0 %v587
        %v589 = vpop.xlane.xlu0 %588
        %v590 = vadd.f32 %v523, %v524
        %591 = vadd.xlane.f32.xlu0 %v590
        %v592 = vpop.xlane.xlu0 %591
        %v593 = vadd.f32 %v525, %v526
        %594 = vadd.xlane.f32.xlu0 %v593
        %v595 = vpop.xlane.xlu0 %594
        %v596 = vadd.f32 %v527, %v528
        %597 = vadd.xlane.f32.xlu0 %v596
        %v598 = vpop.xlane.xlu0 %597
        %v599 = vadd.f32 %v529, %v530
        %600 = vadd.xlane.f32.xlu0 %v599
        %v601 = vpop.xlane.xlu0 %600
        %v602 = vadd.f32 %v531, %v532
        %603 = vadd.xlane.f32.xlu0 %v602
        %v604 = vpop.xlane.xlu0 %603
        %v605 = vadd.f32 %v533, %v534
        %606 = vadd.xlane.f32.xlu0 %v605
        %v607 = vpop.xlane.xlu0 %606
        %v608 = vadd.f32 %v535, %v536
        %609 = vadd.xlane.f32.xlu0 %v608
        %v610 = vpop.xlane.xlu0 %609
        %v611 = vadd.f32 %v537, %v538
        %612 = vadd.xlane.f32.xlu0 %v611
        %v613 = vpop.xlane.xlu0 %612
        %v614 = vadd.f32 %v539, %v540
        %615 = vadd.xlane.f32.xlu0 %v614
        %v616 = vpop.xlane.xlu0 %615
        %v617 = vadd.f32 %v541, %v542
        %618 = vadd.xlane.f32.xlu0 %v617
        %v619 = vpop.xlane.xlu0 %618
        %v620 = vadd.f32 %v543, %v544
        %621 = vadd.xlane.f32.xlu0 %v620
        %v622 = vpop.xlane.xlu0 %621
        %v623 = vadd.f32 %v545, %v546
        %624 = vadd.xlane.f32.xlu0 %v623
        %v625 = vpop.xlane.xlu0 %624
        %v626 = vadd.f32 %v547, %v548
        %627 = vadd.xlane.f32.xlu0 %v626
        %v628 = vpop.xlane.xlu0 %627
        %v629 = vadd.f32 %v549, %v550
        %630 = vadd.xlane.f32.xlu0 %v629
        %v631 = vpop.xlane.xlu0 %630
        %v632 = vadd.f32 %v551, %v552
        %633 = vadd.xlane.f32.xlu0 %v632
        %v634 = vpop.xlane.xlu0 %633
        %v635 = vadd.f32 %v553, %v554
        %636 = vadd.xlane.f32.xlu0 %v635
        %v637 = vpop.xlane.xlu0 %636
        %v638 = vadd.f32 %v555, %v556
        %639 = vadd.xlane.f32.xlu0 %v638
        %v640 = vpop.xlane.xlu0 %639
        %v641 = vadd.f32 %v557, %v558
        %642 = vadd.xlane.f32.xlu0 %v641
        %v643 = vpop.xlane.xlu0 %642
        %v644 = vadd.f32 %v559, %v560
        %645 = vadd.xlane.f32.xlu0 %v644
        %v646 = vpop.xlane.xlu0 %645
        %v647 = vadd.f32 %v561, %v562
        %648 = vadd.xlane.f32.xlu0 %v647
        %v649 = vpop.xlane.xlu0 %648
        %v650 = vadd.f32 %v563, %v564
        %651 = vadd.xlane.f32.xlu0 %v650
        %v652 = vpop.xlane.xlu0 %651
        %v653 = vadd.f32 %v565, %v566
        %654 = vadd.xlane.f32.xlu0 %v653
        %v655 = vpop.xlane.xlu0 %654
        %v656 = vadd.f32 %v567, %v568
        %657 = vadd.xlane.f32.xlu0 %v656
        %v658 = vpop.xlane.xlu0 %657
        %v659 = vadd.f32 %v569, %v570
        %660 = vadd.xlane.f32.xlu0 %v659
        %v661 = vpop.xlane.xlu0 %660
        %v662 = vadd.f32 %v571, %v572
        %663 = vadd.xlane.f32.xlu0 %v662
        %v664 = vpop.xlane.xlu0 %663
        %v665 = vadd.f32 %v573, %v574
        %666 = vadd.xlane.f32.xlu0 %v665
        %v667 = vpop.xlane.xlu0 %666
        %v668 = vadd.f32 %v575, %v576
        %669 = vadd.xlane.f32.xlu0 %v668
        %v670 = vpop.xlane.xlu0 %669
        %v671 = vadd.f32 %v577, %v578
        %672 = vadd.xlane.f32.xlu0 %v671
        %v673 = vpop.xlane.xlu0 %672
        %v674 = vadd.f32 %v579, %v580
        %675 = vadd.xlane.f32.xlu0 %v674
        %v676 = vpop.xlane.xlu0 %675
        %v677 = vrcp.pop 256.0
        %v678 = vmul.f32 256.0, %v677
        %v679 = vsub.f32 1.0, %v678
        %v680 = vmul.f32 %v677, %v679
        %v681 = vadd.f32 %v677, %v680
        %vm682 = vweird.f32 %v677
        %v683 = vsel %vm682, %v677, %v681
        %v684 = vmul.f32 %v583, %v683
        %v685 = vmul.f32 %v586, %v683
        %v686 = vmul.f32 %v589, %v683
        %v687 = vmul.f32 %v592, %v683
        %v688 = vmul.f32 %v595, %v683
        %v689 = vmul.f32 %v598, %v683
        %v690 = vmul.f32 %v601, %v683
        %v691 = vmul.f32 %v604, %v683
        %v692 = vmul.f32 %v607, %v683
        %v693 = vmul.f32 %v610, %v683
        %v694 = vmul.f32 %v613, %v683
        %v695 = vmul.f32 %v616, %v683
        %v696 = vmul.f32 %v619, %v683
        %v697 = vmul.f32 %v622, %v683
        %v698 = vmul.f32 %v625, %v683
        %v699 = vmul.f32 %v628, %v683
        %v700 = vmul.f32 %v631, %v683
        %v701 = vmul.f32 %v634, %v683
        %v702 = vmul.f32 %v637, %v683
        %v703 = vmul.f32 %v640, %v683
        %v704 = vmul.f32 %v643, %v683
        %v705 = vmul.f32 %v646, %v683
        %v706 = vmul.f32 %v649, %v683
        %v707 = vmul.f32 %v652, %v683
        %v708 = vmul.f32 %v655, %v683
        %v709 = vmul.f32 %v658, %v683
        %v710 = vmul.f32 %v661, %v683
        %v711 = vmul.f32 %v664, %v683
        %v712 = vmul.f32 %v667, %v683
        %v713 = vmul.f32 %v670, %v683
        %v714 = vmul.f32 %v673, %v683
        %v715 = vmul.f32 %v676, %v683
        %v716 = vadd.f32 %v684, 1e-06
        %v717 = vadd.f32 %v685, 1e-06
        %v718 = vadd.f32 %v686, 1e-06
        %v719 = vadd.f32 %v687, 1e-06
        %v720 = vadd.f32 %v688, 1e-06
        %v721 = vadd.f32 %v689, 1e-06
        %v722 = vadd.f32 %v690, 1e-06
        %v723 = vadd.f32 %v691, 1e-06
        %v724 = vadd.f32 %v692, 1e-06
        %v725 = vadd.f32 %v693, 1e-06
        %v726 = vadd.f32 %v694, 1e-06
        %v727 = vadd.f32 %v695, 1e-06
        %v728 = vadd.f32 %v696, 1e-06
        %v729 = vadd.f32 %v697, 1e-06
        %v730 = vadd.f32 %v698, 1e-06
        %v731 = vadd.f32 %v699, 1e-06
        %v732 = vadd.f32 %v700, 1e-06
        %v733 = vadd.f32 %v701, 1e-06
        %v734 = vadd.f32 %v702, 1e-06
        %v735 = vadd.f32 %v703, 1e-06
        %v736 = vadd.f32 %v704, 1e-06
        %v737 = vadd.f32 %v705, 1e-06
        %v738 = vadd.f32 %v706, 1e-06
        %v739 = vadd.f32 %v707, 1e-06
        %v740 = vadd.f32 %v708, 1e-06
        %v741 = vadd.f32 %v709, 1e-06
        %v742 = vadd.f32 %v710, 1e-06
        %v743 = vadd.f32 %v711, 1e-06
        %v744 = vadd.f32 %v712, 1e-06
        %v745 = vadd.f32 %v713, 1e-06
        %v746 = vadd.f32 %v714, 1e-06
        %v747 = vadd.f32 %v715, 1e-06
        %v748 = vrsqrt.pop %v716
        %v749 = vmul.f32 %v748, %v716
        %v750 = vmul.f32 %v749, %v748
        %v751 = vmul.f32 0.5, %v750
        %v752 = vsub.f32 1.5, %v751
        %v753 = vmul.f32 %v748, %v752
        %vm754 = vweird.f32 %v716
        %vm755 = vweird.f32 %v748
        %vm756 = vmor %vm754, %vm755
        %v757 = vsel %vm756, %v748, %v753
        %v758 = vrsqrt.pop %v717
        %v759 = vmul.f32 %v758, %v717
        %v760 = vmul.f32 %v759, %v758
        %v761 = vmul.f32 0.5, %v760
        %v762 = vsub.f32 1.5, %v761
        %v763 = vmul.f32 %v758, %v762
        %vm764 = vweird.f32 %v717
        %vm765 = vweird.f32 %v758
        %vm766 = vmor %vm764, %vm765
        %v767 = vsel %vm766, %v758, %v763
        %v768 = vrsqrt.pop %v718
        %v769 = vmul.f32 %v768, %v718
        %v770 = vmul.f32 %v769, %v768
        %v771 = vmul.f32 0.5, %v770
        %v772 = vsub.f32 1.5, %v771
        %v773 = vmul.f32 %v768, %v772
        %vm774 = vweird.f32 %v718
        %vm775 = vweird.f32 %v768
        %vm776 = vmor %vm774, %vm775
        %v777 = vsel %vm776, %v768, %v773
        %v778 = vrsqrt.pop %v719
        %v779 = vmul.f32 %v778, %v719
        %v780 = vmul.f32 %v779, %v778
        %v781 = vmul.f32 0.5, %v780
        %v782 = vsub.f32 1.5, %v781
        %v783 = vmul.f32 %v778, %v782
        %vm784 = vweird.f32 %v719
        %vm785 = vweird.f32 %v778
        %vm786 = vmor %vm784, %vm785
        %v787 = vsel %vm786, %v778, %v783
        %v788 = vrsqrt.pop %v720
        %v789 = vmul.f32 %v788, %v720
        %v790 = vmul.f32 %v789, %v788
        %v791 = vmul.f32 0.5, %v790
        %v792 = vsub.f32 1.5, %v791
        %v793 = vmul.f32 %v788, %v792
        %vm794 = vweird.f32 %v720
        %vm795 = vweird.f32 %v788
        %vm796 = vmor %vm794, %vm795
        %v797 = vsel %vm796, %v788, %v793
        %v798 = vrsqrt.pop %v721
        %v799 = vmul.f32 %v798, %v721
        %v800 = vmul.f32 %v799, %v798
        %v801 = vmul.f32 0.5, %v800
        %v802 = vsub.f32 1.5, %v801
        %v803 = vmul.f32 %v798, %v802
        %vm804 = vweird.f32 %v721
        %vm805 = vweird.f32 %v798
        %vm806 = vmor %vm804, %vm805
        %v807 = vsel %vm806, %v798, %v803
        %v808 = vrsqrt.pop %v722
        %v809 = vmul.f32 %v808, %v722
        %v810 = vmul.f32 %v809, %v808
        %v811 = vmul.f32 0.5, %v810
        %v812 = vsub.f32 1.5, %v811
        %v813 = vmul.f32 %v808, %v812
        %vm814 = vweird.f32 %v722
        %vm815 = vweird.f32 %v808
        %vm816 = vmor %vm814, %vm815
        %v817 = vsel %vm816, %v808, %v813
        %v818 = vrsqrt.pop %v723
        %v819 = vmul.f32 %v818, %v723
        %v820 = vmul.f32 %v819, %v818
        %v821 = vmul.f32 0.5, %v820
        %v822 = vsub.f32 1.5, %v821
        %v823 = vmul.f32 %v818, %v822
        %vm824 = vweird.f32 %v723
        %vm825 = vweird.f32 %v818
        %vm826 = vmor %vm824, %vm825
        %v827 = vsel %vm826, %v818, %v823
        %v828 = vrsqrt.pop %v724
        %v829 = vmul.f32 %v828, %v724
        %v830 = vmul.f32 %v829, %v828
        %v831 = vmul.f32 0.5, %v830
        %v832 = vsub.f32 1.5, %v831
        %v833 = vmul.f32 %v828, %v832
        %vm834 = vweird.f32 %v724
        %vm835 = vweird.f32 %v828
        %vm836 = vmor %vm834, %vm835
        %v837 = vsel %vm836, %v828, %v833
        %v838 = vrsqrt.pop %v725
        %v839 = vmul.f32 %v838, %v725
        %v840 = vmul.f32 %v839, %v838
        %v841 = vmul.f32 0.5, %v840
        %v842 = vsub.f32 1.5, %v841
        %v843 = vmul.f32 %v838, %v842
        %vm844 = vweird.f32 %v725
        %vm845 = vweird.f32 %v838
        %vm846 = vmor %vm844, %vm845
        %v847 = vsel %vm846, %v838, %v843
        %v848 = vrsqrt.pop %v726
        %v849 = vmul.f32 %v848, %v726
        %v850 = vmul.f32 %v849, %v848
        %v851 = vmul.f32 0.5, %v850
        %v852 = vsub.f32 1.5, %v851
        %v853 = vmul.f32 %v848, %v852
        %vm854 = vweird.f32 %v726
        %vm855 = vweird.f32 %v848
        %vm856 = vmor %vm854, %vm855
        %v857 = vsel %vm856, %v848, %v853
        %v858 = vrsqrt.pop %v727
        %v859 = vmul.f32 %v858, %v727
        %v860 = vmul.f32 %v859, %v858
        %v861 = vmul.f32 0.5, %v860
        %v862 = vsub.f32 1.5, %v861
        %v863 = vmul.f32 %v858, %v862
        %vm864 = vweird.f32 %v727
        %vm865 = vweird.f32 %v858
        %vm866 = vmor %vm864, %vm865
        %v867 = vsel %vm866, %v858, %v863
        %v868 = vrsqrt.pop %v728
        %v869 = vmul.f32 %v868, %v728
        %v870 = vmul.f32 %v869, %v868
        %v871 = vmul.f32 0.5, %v870
        %v872 = vsub.f32 1.5, %v871
        %v873 = vmul.f32 %v868, %v872
        %vm874 = vweird.f32 %v728
        %vm875 = vweird.f32 %v868
        %vm876 = vmor %vm874, %vm875
        %v877 = vsel %vm876, %v868, %v873
        %v878 = vrsqrt.pop %v729
        %v879 = vmul.f32 %v878, %v729
        %v880 = vmul.f32 %v879, %v878
        %v881 = vmul.f32 0.5, %v880
        %v882 = vsub.f32 1.5, %v881
        %v883 = vmul.f32 %v878, %v882
        %vm884 = vweird.f32 %v729
        %vm885 = vweird.f32 %v878
        %vm886 = vmor %vm884, %vm885
        %v887 = vsel %vm886, %v878, %v883
        %v888 = vrsqrt.pop %v730
        %v889 = vmul.f32 %v888, %v730
        %v890 = vmul.f32 %v889, %v888
        %v891 = vmul.f32 0.5, %v890
        %v892 = vsub.f32 1.5, %v891
        %v893 = vmul.f32 %v888, %v892
        %vm894 = vweird.f32 %v730
        %vm895 = vweird.f32 %v888
        %vm896 = vmor %vm894, %vm895
        %v897 = vsel %vm896, %v888, %v893
        %v898 = vrsqrt.pop %v731
        %v899 = vmul.f32 %v898, %v731
        %v900 = vmul.f32 %v899, %v898
        %v901 = vmul.f32 0.5, %v900
        %v902 = vsub.f32 1.5, %v901
        %v903 = vmul.f32 %v898, %v902
        %vm904 = vweird.f32 %v731
        %vm905 = vweird.f32 %v898
        %vm906 = vmor %vm904, %vm905
        %v907 = vsel %vm906, %v898, %v903
        %v908 = vrsqrt.pop %v732
        %v909 = vmul.f32 %v908, %v732
        %v910 = vmul.f32 %v909, %v908
        %v911 = vmul.f32 0.5, %v910
        %v912 = vsub.f32 1.5, %v911
        %v913 = vmul.f32 %v908, %v912
        %vm914 = vweird.f32 %v732
        %vm915 = vweird.f32 %v908
        %vm916 = vmor %vm914, %vm915
        %v917 = vsel %vm916, %v908, %v913
        %v918 = vrsqrt.pop %v733
        %v919 = vmul.f32 %v918, %v733
        %v920 = vmul.f32 %v919, %v918
        %v921 = vmul.f32 0.5, %v920
        %v922 = vsub.f32 1.5, %v921
        %v923 = vmul.f32 %v918, %v922
        %vm924 = vweird.f32 %v733
        %vm925 = vweird.f32 %v918
        %vm926 = vmor %vm924, %vm925
        %v927 = vsel %vm926, %v918, %v923
        %v928 = vrsqrt.pop %v734
        %v929 = vmul.f32 %v928, %v734
        %v930 = vmul.f32 %v929, %v928
        %v931 = vmul.f32 0.5, %v930
        %v932 = vsub.f32 1.5, %v931
        %v933 = vmul.f32 %v928, %v932
        %vm934 = vweird.f32 %v734
        %vm935 = vweird.f32 %v928
        %vm936 = vmor %vm934, %vm935
        %v937 = vsel %vm936, %v928, %v933
        %v938 = vrsqrt.pop %v735
        %v939 = vmul.f32 %v938, %v735
        %v940 = vmul.f32 %v939, %v938
        %v941 = vmul.f32 0.5, %v940
        %v942 = vsub.f32 1.5, %v941
        %v943 = vmul.f32 %v938, %v942
        %vm944 = vweird.f32 %v735
        %vm945 = vweird.f32 %v938
        %vm946 = vmor %vm944, %vm945
        %v947 = vsel %vm946, %v938, %v943
        %v948 = vrsqrt.pop %v736
        %v949 = vmul.f32 %v948, %v736
        %v950 = vmul.f32 %v949, %v948
        %v951 = vmul.f32 0.5, %v950
        %v952 = vsub.f32 1.5, %v951
        %v953 = vmul.f32 %v948, %v952
        %vm954 = vweird.f32 %v736
        %vm955 = vweird.f32 %v948
        %vm956 = vmor %vm954, %vm955
        %v957 = vsel %vm956, %v948, %v953
        %v958 = vrsqrt.pop %v737
        %v959 = vmul.f32 %v958, %v737
        %v960 = vmul.f32 %v959, %v958
        %v961 = vmul.f32 0.5, %v960
        %v962 = vsub.f32 1.5, %v961
        %v963 = vmul.f32 %v958, %v962
        %vm964 = vweird.f32 %v737
        %vm965 = vweird.f32 %v958
        %vm966 = vmor %vm964, %vm965
        %v967 = vsel %vm966, %v958, %v963
        %v968 = vrsqrt.pop %v738
        %v969 = vmul.f32 %v968, %v738
        %v970 = vmul.f32 %v969, %v968
        %v971 = vmul.f32 0.5, %v970
        %v972 = vsub.f32 1.5, %v971
        %v973 = vmul.f32 %v968, %v972
        %vm974 = vweird.f32 %v738
        %vm975 = vweird.f32 %v968
        %vm976 = vmor %vm974, %vm975
        %v977 = vsel %vm976, %v968, %v973
        %v978 = vrsqrt.pop %v739
        %v979 = vmul.f32 %v978, %v739
        %v980 = vmul.f32 %v979, %v978
        %v981 = vmul.f32 0.5, %v980
        %v982 = vsub.f32 1.5, %v981
        %v983 = vmul.f32 %v978, %v982
        %vm984 = vweird.f32 %v739
        %vm985 = vweird.f32 %v978
        %vm986 = vmor %vm984, %vm985
        %v987 = vsel %vm986, %v978, %v983
        %v988 = vrsqrt.pop %v740
        %v989 = vmul.f32 %v988, %v740
        %v990 = vmul.f32 %v989, %v988
        %v991 = vmul.f32 0.5, %v990
        %v992 = vsub.f32 1.5, %v991
        %v993 = vmul.f32 %v988, %v992
        %vm994 = vweird.f32 %v740
        %vm995 = vweird.f32 %v988
        %vm996 = vmor %vm994, %vm995
        %v997 = vsel %vm996, %v988, %v993
        %v998 = vrsqrt.pop %v741
        %v999 = vmul.f32 %v998, %v741
        %v1000 = vmul.f32 %v999, %v998
        %v1001 = vmul.f32 0.5, %v1000
        %v1002 = vsub.f32 1.5, %v1001
        %v1003 = vmul.f32 %v998, %v1002
        %vm1004 = vweird.f32 %v741
        %vm1005 = vweird.f32 %v998
        %vm1006 = vmor %vm1004, %vm1005
        %v1007 = vsel %vm1006, %v998, %v1003
        %v1008 = vrsqrt.pop %v742
        %v1009 = vmul.f32 %v1008, %v742
        %v1010 = vmul.f32 %v1009, %v1008
        %v1011 = vmul.f32 0.5, %v1010
        %v1012 = vsub.f32 1.5, %v1011
        %v1013 = vmul.f32 %v1008, %v1012
        %vm1014 = vweird.f32 %v742
        %vm1015 = vweird.f32 %v1008
        %vm1016 = vmor %vm1014, %vm1015
        %v1017 = vsel %vm1016, %v1008, %v1013
        %v1018 = vrsqrt.pop %v743
        %v1019 = vmul.f32 %v1018, %v743
        %v1020 = vmul.f32 %v1019, %v1018
        %v1021 = vmul.f32 0.5, %v1020
        %v1022 = vsub.f32 1.5, %v1021
        %v1023 = vmul.f32 %v1018, %v1022
        %vm1024 = vweird.f32 %v743
        %vm1025 = vweird.f32 %v1018
        %vm1026 = vmor %vm1024, %vm1025
        %v1027 = vsel %vm1026, %v1018, %v1023
        %v1028 = vrsqrt.pop %v744
        %v1029 = vmul.f32 %v1028, %v744
        %v1030 = vmul.f32 %v1029, %v1028
        %v1031 = vmul.f32 0.5, %v1030
        %v1032 = vsub.f32 1.5, %v1031
        %v1033 = vmul.f32 %v1028, %v1032
        %vm1034 = vweird.f32 %v744
        %vm1035 = vweird.f32 %v1028
        %vm1036 = vmor %vm1034, %vm1035
        %v1037 = vsel %vm1036, %v1028, %v1033
        %v1038 = vrsqrt.pop %v745
        %v1039 = vmul.f32 %v1038, %v745
        %v1040 = vmul.f32 %v1039, %v1038
        %v1041 = vmul.f32 0.5, %v1040
        %v1042 = vsub.f32 1.5, %v1041
        %v1043 = vmul.f32 %v1038, %v1042
        %vm1044 = vweird.f32 %v745
        %vm1045 = vweird.f32 %v1038
        %vm1046 = vmor %vm1044, %vm1045
        %v1047 = vsel %vm1046, %v1038, %v1043
        %v1048 = vrsqrt.pop %v746
        %v1049 = vmul.f32 %v1048, %v746
        %v1050 = vmul.f32 %v1049, %v1048
        %v1051 = vmul.f32 0.5, %v1050
        %v1052 = vsub.f32 1.5, %v1051
        %v1053 = vmul.f32 %v1048, %v1052
        %vm1054 = vweird.f32 %v746
        %vm1055 = vweird.f32 %v1048
        %vm1056 = vmor %vm1054, %vm1055
        %v1057 = vsel %vm1056, %v1048, %v1053
        %v1058 = vrsqrt.pop %v747
        %v1059 = vmul.f32 %v1058, %v747
        %v1060 = vmul.f32 %v1059, %v1058
        %v1061 = vmul.f32 0.5, %v1060
        %v1062 = vsub.f32 1.5, %v1061
        %v1063 = vmul.f32 %v1058, %v1062
        %vm1064 = vweird.f32 %v747
        %vm1065 = vweird.f32 %v1058
        %vm1066 = vmor %vm1064, %vm1065
        %v1067 = vsel %vm1066, %v1058, %v1063
        %v1068 = vmul.f32 %v452, %v757
        %v1069 = vmul.f32 %v453, %v757
        %v1070 = vmul.f32 %v454, %v767
        %v1071 = vmul.f32 %v455, %v767
        %v1072 = vmul.f32 %v456, %v777
        %v1073 = vmul.f32 %v457, %v777
        %v1074 = vmul.f32 %v458, %v787
        %v1075 = vmul.f32 %v459, %v787
        %v1076 = vmul.f32 %v460, %v797
        %v1077 = vmul.f32 %v461, %v797
        %v1078 = vmul.f32 %v462, %v807
        %v1079 = vmul.f32 %v463, %v807
        %v1080 = vmul.f32 %v464, %v817
        %v1081 = vmul.f32 %v465, %v817
        %v1082 = vmul.f32 %v466, %v827
        %v1083 = vmul.f32 %v467, %v827
        %v1084 = vmul.f32 %v468, %v837
        %v1085 = vmul.f32 %v469, %v837
        %v1086 = vmul.f32 %v470, %v847
        %v1087 = vmul.f32 %v471, %v847
        %v1088 = vmul.f32 %v472, %v857
        %v1089 = vmul.f32 %v473, %v857
        %v1090 = vmul.f32 %v474, %v867
        %v1091 = vmul.f32 %v475, %v867
        %v1092 = vmul.f32 %v476, %v877
        %v1093 = vmul.f32 %v477, %v877
        %v1094 = vmul.f32 %v478, %v887
        %v1095 = vmul.f32 %v479, %v887
        %v1096 = vmul.f32 %v480, %v897
        %v1097 = vmul.f32 %v481, %v897
        %v1098 = vmul.f32 %v482, %v907
        %v1099 = vmul.f32 %v483, %v907
        %v1100 = vmul.f32 %v484, %v917
        %v1101 = vmul.f32 %v485, %v917
        %v1102 = vmul.f32 %v486, %v927
        %v1103 = vmul.f32 %v487, %v927
        %v1104 = vmul.f32 %v488, %v937
        %v1105 = vmul.f32 %v489, %v937
        %v1106 = vmul.f32 %v490, %v947
        %v1107 = vmul.f32 %v491, %v947
        %v1108 = vmul.f32 %v492, %v957
        %v1109 = vmul.f32 %v493, %v957
        %v1110 = vmul.f32 %v494, %v967
        %v1111 = vmul.f32 %v495, %v967
        %v1112 = vmul.f32 %v496, %v977
        %v1113 = vmul.f32 %v497, %v977
        %v1114 = vmul.f32 %v498, %v987
        %v1115 = vmul.f32 %v499, %v987
        %v1116 = vmul.f32 %v500, %v997
        %v1117 = vmul.f32 %v501, %v997
        %v1118 = vmul.f32 %v502, %v1007
        %v1119 = vmul.f32 %v503, %v1007
        %v1120 = vmul.f32 %v504, %v1017
        %v1121 = vmul.f32 %v505, %v1017
        %v1122 = vmul.f32 %v506, %v1027
        %v1123 = vmul.f32 %v507, %v1027
        %v1124 = vmul.f32 %v508, %v1037
        %v1125 = vmul.f32 %v509, %v1037
        %v1126 = vmul.f32 %v510, %v1047
        %v1127 = vmul.f32 %v511, %v1047
        %v1128 = vmul.f32 %v512, %v1057
        %v1129 = vmul.f32 %v513, %v1057
        %v1130 = vmul.f32 %v514, %v1067
        %v1131 = vmul.f32 %v515, %v1067
        %v1132 = vadd.f32 %v516, 1.0
        %v1134 = vperm.slane %v1132, 0
        %v1135 = vperm.slane %v1132, 1
        %v1138 = vmul.f32 %v1068, %v1134
        %v1139 = vmul.f32 %v1069, %v1135
        %v1140 = vmul.f32 %v1070, %v1134
        %v1141 = vmul.f32 %v1071, %v1135
        %v1142 = vmul.f32 %v1072, %v1134
        %v1143 = vmul.f32 %v1073, %v1135
        %v1144 = vmul.f32 %v1074, %v1134
        %v1145 = vmul.f32 %v1075, %v1135
        %v1146 = vmul.f32 %v1076, %v1134
        %v1147 = vmul.f32 %v1077, %v1135
        %v1148 = vmul.f32 %v1078, %v1134
        %v1149 = vmul.f32 %v1079, %v1135
        %v1150 = vmul.f32 %v1080, %v1134
        %v1151 = vmul.f32 %v1081, %v1135
        %v1152 = vmul.f32 %v1082, %v1134
        %v1153 = vmul.f32 %v1083, %v1135
        %v1154 = vmul.f32 %v1084, %v1134
        %v1155 = vmul.f32 %v1085, %v1135
        %v1156 = vmul.f32 %v1086, %v1134
        %v1157 = vmul.f32 %v1087, %v1135
        %v1158 = vmul.f32 %v1088, %v1134
        %v1159 = vmul.f32 %v1089, %v1135
        %v1160 = vmul.f32 %v1090, %v1134
        %v1161 = vmul.f32 %v1091, %v1135
        %v1162 = vmul.f32 %v1092, %v1134
        %v1163 = vmul.f32 %v1093, %v1135
        %v1164 = vmul.f32 %v1094, %v1134
        %v1165 = vmul.f32 %v1095, %v1135
        %v1166 = vmul.f32 %v1096, %v1134
        %v1167 = vmul.f32 %v1097, %v1135
        %v1168 = vmul.f32 %v1098, %v1134
        %v1169 = vmul.f32 %v1099, %v1135
        %v1170 = vmul.f32 %v1100, %v1134
        %v1171 = vmul.f32 %v1101, %v1135
        %v1172 = vmul.f32 %v1102, %v1134
        %v1173 = vmul.f32 %v1103, %v1135
        %v1174 = vmul.f32 %v1104, %v1134
        %v1175 = vmul.f32 %v1105, %v1135
        %v1176 = vmul.f32 %v1106, %v1134
        %v1177 = vmul.f32 %v1107, %v1135
        %v1178 = vmul.f32 %v1108, %v1134
        %v1179 = vmul.f32 %v1109, %v1135
        %v1180 = vmul.f32 %v1110, %v1134
        %v1181 = vmul.f32 %v1111, %v1135
        %v1182 = vmul.f32 %v1112, %v1134
        %v1183 = vmul.f32 %v1113, %v1135
        %v1184 = vmul.f32 %v1114, %v1134
        %v1185 = vmul.f32 %v1115, %v1135
        %v1186 = vmul.f32 %v1116, %v1134
        %v1187 = vmul.f32 %v1117, %v1135
        %v1188 = vmul.f32 %v1118, %v1134
        %v1189 = vmul.f32 %v1119, %v1135
        %v1190 = vmul.f32 %v1120, %v1134
        %v1191 = vmul.f32 %v1121, %v1135
        %v1192 = vmul.f32 %v1122, %v1134
        %v1193 = vmul.f32 %v1123, %v1135
        %v1194 = vmul.f32 %v1124, %v1134
        %v1195 = vmul.f32 %v1125, %v1135
        %v1196 = vmul.f32 %v1126, %v1134
        %v1197 = vmul.f32 %v1127, %v1135
        %v1198 = vmul.f32 %v1128, %v1134
        %v1199 = vmul.f32 %v1129, %v1135
        %v1200 = vmul.f32 %v1130, %v1134
        %v1201 = vmul.f32 %v1131, %v1135
        %v1202 = vld [vmem:[#allocation8] sm:$0xff]
        %v1203 = vld [vmem:[#allocation8 + $0x8] sm:$0xff]
        %v1204 = vld [vmem:[#allocation8 + $0x10] sm:$0xff]
        %v1205 = vld [vmem:[#allocation8 + $0x18] sm:$0xff]
        %v1206 = vld [vmem:[#allocation8 + $0x20] sm:$0xff]
        %v1207 = vld [vmem:[#allocation8 + $0x28] sm:$0xff]
        %v1208 = vld [vmem:[#allocation8 + $0x30] sm:$0xff]
        %v1209 = vld [vmem:[#allocation8 + $0x38] sm:$0xff]
        %v1210 = vld [vmem:[#allocation8 + $0x40] sm:$0xff]
        %v1211 = vld [vmem:[#allocation8 + $0x48] sm:$0xff]
        %v1212 = vld [vmem:[#allocation8 + $0x50] sm:$0xff]
        %v1213 = vld [vmem:[#allocation8 + $0x58] sm:$0xff]
        %v1214 = vld [vmem:[#allocation8 + $0x60] sm:$0xff]
        %v1215 = vld [vmem:[#allocation8 + $0x68] sm:$0xff]
        %v1216 = vld [vmem:[#allocation8 + $0x70] sm:$0xff]
        %v1217 = vld [vmem:[#allocation8 + $0x78] sm:$0xff]
        %v1218 = vld [vmem:[#allocation8 + $0x80] sm:$0xff]
        %v1219 = vld [vmem:[#allocation8 + $0x88] sm:$0xff]
        %v1220 = vld [vmem:[#allocation8 + $0x90] sm:$0xff]
        %v1221 = vld [vmem:[#allocation8 + $0x98] sm:$0xff]
        %v1222 = vld [vmem:[#allocation8 + $0xa0] sm:$0xff]
        %v1223 = vld [vmem:[#allocation8 + $0xa8] sm:$0xff]
        %v1224 = vld [vmem:[#allocation8 + $0xb0] sm:$0xff]
        %v1225 = vld [vmem:[#allocation8 + $0xb8] sm:$0xff]
        %v1226 = vld [vmem:[#allocation8 + $0xc0] sm:$0xff]
        %v1227 = vld [vmem:[#allocation8 + $0xc8] sm:$0xff]
        %v1228 = vld [vmem:[#allocation8 + $0xd0] sm:$0xff]
        %v1229 = vld [vmem:[#allocation8 + $0xd8] sm:$0xff]
        %v1230 = vld [vmem:[#allocation8 + $0xe0] sm:$0xff]
        %v1231 = vld [vmem:[#allocation8 + $0xe8] sm:$0xff]
        %v1232 = vld [vmem:[#allocation8 + $0xf0] sm:$0xff]
        %v1233 = vld [vmem:[#allocation8 + $0xf8] sm:$0xff]
        %v1234 = vld [vmem:[#allocation8 + $0x100] sm:$0xff]
        %v1235 = vld [vmem:[#allocation8 + $0x108] sm:$0xff]
        %v1236 = vld [vmem:[#allocation8 + $0x110] sm:$0xff]
        %v1237 = vld [vmem:[#allocation8 + $0x118] sm:$0xff]
        %v1238 = vld [vmem:[#allocation8 + $0x120] sm:$0xff]
        %v1239 = vld [vmem:[#allocation8 + $0x128] sm:$0xff]
        %v1240 = vld [vmem:[#allocation8 + $0x130] sm:$0xff]
        %v1241 = vld [vmem:[#allocation8 + $0x138] sm:$0xff]
        %v1242 = vld [vmem:[#allocation8 + $0x140] sm:$0xff]
        %v1243 = vld [vmem:[#allocation8 + $0x148] sm:$0xff]
        %v1244 = vld [vmem:[#allocation8 + $0x150] sm:$0xff]
        %v1245 = vld [vmem:[#allocation8 + $0x158] sm:$0xff]
        %v1246 = vld [vmem:[#allocation8 + $0x160] sm:$0xff]
        %v1247 = vld [vmem:[#allocation8 + $0x168] sm:$0xff]
        %v1248 = vld [vmem:[#allocation8 + $0x170] sm:$0xff]
        %v1249 = vld [vmem:[#allocation8 + $0x178] sm:$0xff]
        %v1250 = vld [vmem:[#allocation8 + $0x180] sm:$0xff]
        %v1251 = vld [vmem:[#allocation8 + $0x188] sm:$0xff]
        %v1252 = vld [vmem:[#allocation8 + $0x190] sm:$0xff]
        %v1253 = vld [vmem:[#allocation8 + $0x198] sm:$0xff]
        %v1254 = vld [vmem:[#allocation8 + $0x1a0] sm:$0xff]
        %v1255 = vld [vmem:[#allocation8 + $0x1a8] sm:$0xff]
        %v1256 = vld [vmem:[#allocation8 + $0x1b0] sm:$0xff]
        %v1257 = vld [vmem:[#allocation8 + $0x1b8] sm:$0xff]
        %v1258 = vld [vmem:[#allocation8 + $0x1c0] sm:$0xff]
        %v1259 = vld [vmem:[#allocation8 + $0x1c8] sm:$0xff]
        %v1260 = vld [vmem:[#allocation8 + $0x1d0] sm:$0xff]
        %v1261 = vld [vmem:[#allocation8 + $0x1d8] sm:$0xff]
        %v1262 = vld [vmem:[#allocation8 + $0x1e0] sm:$0xff]
        %v1263 = vld [vmem:[#allocation8 + $0x1e8] sm:$0xff]
        %v1264 = vld [vmem:[#allocation8 + $0x1f0] sm:$0xff]
        %v1265 = vld [vmem:[#allocation8 + $0x1f8] sm:$0xff]
        %v1266 = vld [vmem:[#allocation8 + $0x200] sm:$0xff]
        %v1267 = vld [vmem:[#allocation8 + $0x208] sm:$0xff]
        %v1268 = vld [vmem:[#allocation8 + $0x210] sm:$0xff]
        %v1269 = vld [vmem:[#allocation8 + $0x218] sm:$0xff]
        %v1270 = vld [vmem:[#allocation8 + $0x220] sm:$0xff]
        %v1271 = vld [vmem:[#allocation8 + $0x228] sm:$0xff]
        %v1272 = vld [vmem:[#allocation8 + $0x230] sm:$0xff]
        %v1273 = vld [vmem:[#allocation8 + $0x238] sm:$0xff]
        %v1274 = vld [vmem:[#allocation8 + $0x240] sm:$0xff]
        %v1275 = vld [vmem:[#allocation8 + $0x248] sm:$0xff]
        %v1276 = vld [vmem:[#allocation8 + $0x250] sm:$0xff]
        %v1277 = vld [vmem:[#allocation8 + $0x258] sm:$0xff]
        %v1278 = vld [vmem:[#allocation8 + $0x260] sm:$0xff]
        %v1279 = vld [vmem:[#allocation8 + $0x268] sm:$0xff]
        %v1280 = vld [vmem:[#allocation8 + $0x270] sm:$0xff]
        %v1281 = vld [vmem:[#allocation8 + $0x278] sm:$0xff]
        %v1282 = vld [vmem:[#allocation8 + $0x280] sm:$0xff]
        %v1283 = vld [vmem:[#allocation8 + $0x288] sm:$0xff]
        %v1284 = vld [vmem:[#allocation8 + $0x290] sm:$0xff]
        %v1285 = vld [vmem:[#allocation8 + $0x298] sm:$0xff]
        %v1286 = vld [vmem:[#allocation8 + $0x2a0] sm:$0xff]
        %v1287 = vld [vmem:[#allocation8 + $0x2a8] sm:$0xff]
        %v1288 = vld [vmem:[#allocation8 + $0x2b0] sm:$0xff]
        %v1289 = vld [vmem:[#allocation8 + $0x2b8] sm:$0xff]
        %v1290 = vld [vmem:[#allocation8 + $0x2c0] sm:$0xff]
        %v1291 = vld [vmem:[#allocation8 + $0x2c8] sm:$0xff]
        %v1292 = vld [vmem:[#allocation8 + $0x2d0] sm:$0xff]
        %v1293 = vld [vmem:[#allocation8 + $0x2d8] sm:$0xff]
        %v1294 = vld [vmem:[#allocation8 + $0x2e0] sm:$0xff]
        %v1295 = vld [vmem:[#allocation8 + $0x2e8] sm:$0xff]
        %v1296 = vld [vmem:[#allocation8 + $0x2f0] sm:$0xff]
        %v1297 = vld [vmem:[#allocation8 + $0x2f8] sm:$0xff]
        %1298 = vmatpush.msra.mxu0 %v1247
        %1299 = vmatpush.msra.mxu0 %v1244
        %1300 = vmatpush.msra.mxu0 %v1241
        %1301 = vmatpush.msra.mxu0 %v1238
        %1302 = vmatpush.msra.mxu0 %v1235
        %1303 = vmatpush.msra.mxu0 %v1232
        %1304 = vmatpush.msra.mxu0 %v1229
        %1305 = vmatpush.msra.mxu0 %v1226
        %1306 = vmatpush.msra.mxu0 %v1223
        %1307 = vmatpush.msra.mxu0 %v1220
        %1308 = vmatpush.msra.mxu0 %v1217
        %1309 = vmatpush.msra.mxu0 %v1214
        %1310 = vmatpush.msra.mxu0 %v1211
        %1311 = vmatpush.msra.mxu0 %v1208
        %1312 = vmatpush.msra.mxu0 %v1205
        %1313 = vmatpush.msra.mxu0 %v1202
        %1314 = vmatmul.f32.gmra.mxu0 %v1138
        %v1315 = vpop.f32.mrf.mxu0
        %v1316 = vadd.f32 0.0, %v1315
        %1317 = vmatmul.f32.gmra.mxu0 %v1140
        %v1318 = vpop.f32.mrf.mxu0
        %v1319 = vadd.f32 0.0, %v1318
        %1320 = vmatmul.f32.gmra.mxu0 %v1142
        %v1321 = vpop.f32.mrf.mxu0
        %v1322 = vadd.f32 0.0, %v1321
        %1323 = vmatmul.f32.gmra.mxu0 %v1144
        %v1324 = vpop.f32.mrf.mxu0
        %v1325 = vadd.f32 0.0, %v1324
        %1326 = vmatmul.f32.gmra.mxu0 %v1146
        %v1327 = vpop.f32.mrf.mxu0
        %v1328 = vadd.f32 0.0, %v1327
        %1329 = vmatmul.f32.gmra.mxu0 %v1148
        %v1330 = vpop.f32.mrf.mxu0
        %v1331 = vadd.f32 0.0, %v1330
        %1332 = vmatmul.f32.gmra.mxu0 %v1150
        %v1333 = vpop.f32.mrf.mxu0
        %v1334 = vadd.f32 0.0, %v1333
        %1335 = vmatmul.f32.gmra.mxu0 %v1152
        %v1336 = vpop.f32.mrf.mxu0
        %v1337 = vadd.f32 0.0, %v1336
        %1338 = vmatmul.f32.gmra.mxu0 %v1154
        %v1339 = vpop.f32.mrf.mxu0
        %v1340 = vadd.f32 0.0, %v1339
        %1341 = vmatmul.f32.gmra.mxu0 %v1156
        %v1342 = vpop.f32.mrf.mxu0
        %v1343 = vadd.f32 0.0, %v1342
        %1344 = vmatmul.f32.gmra.mxu0 %v1158
        %v1345 = vpop.f32.mrf.mxu0
        %v1346 = vadd.f32 0.0, %v1345
        %1347 = vmatmul.f32.gmra.mxu0 %v1160
        %v1348 = vpop.f32.mrf.mxu0
        %v1349 = vadd.f32 0.0, %v1348
        %1350 = vmatmul.f32.gmra.mxu0 %v1162
        %v1351 = vpop.f32.mrf.mxu0
        %v1352 = vadd.f32 0.0, %v1351
        %1353 = vmatmul.f32.gmra.mxu0 %v1164
        %v1354 = vpop.f32.mrf.mxu0
        %v1355 = vadd.f32 0.0, %v1354
        %1356 = vmatmul.f32.gmra.mxu0 %v1166
        %v1357 = vpop.f32.mrf.mxu0
        %v1358 = vadd.f32 0.0, %v1357
        %1359 = vmatmul.f32.gmra.mxu0 %v1168
        %v1360 = vpop.f32.mrf.mxu0
        %v1361 = vadd.f32 0.0, %v1360
        %1362 = vmatmul.f32.gmra.mxu0 %v1170
        %v1363 = vpop.f32.mrf.mxu0
        %v1364 = vadd.f32 0.0, %v1363
        %1365 = vmatmul.f32.gmra.mxu0 %v1172
        %v1366 = vpop.f32.mrf.mxu0
        %v1367 = vadd.f32 0.0, %v1366
        %1368 = vmatmul.f32.gmra.mxu0 %v1174
        %v1369 = vpop.f32.mrf.mxu0
        %v1370 = vadd.f32 0.0, %v1369
        %1371 = vmatmul.f32.gmra.mxu0 %v1176
        %v1372 = vpop.f32.mrf.mxu0
        %v1373 = vadd.f32 0.0, %v1372
        %1374 = vmatmul.f32.gmra.mxu0 %v1178
        %v1375 = vpop.f32.mrf.mxu0
        %v1376 = vadd.f32 0.0, %v1375
        %1377 = vmatmul.f32.gmra.mxu0 %v1180
        %v1378 = vpop.f32.mrf.mxu0
        %v1379 = vadd.f32 0.0, %v1378
        %1380 = vmatmul.f32.gmra.mxu0 %v1182
        %v1381 = vpop.f32.mrf.mxu0
        %v1382 = vadd.f32 0.0, %v1381
        %1383 = vmatmul.f32.gmra.mxu0 %v1184
        %v1384 = vpop.f32.mrf.mxu0
        %v1385 = vadd.f32 0.0, %v1384
        %1386 = vmatmul.f32.gmra.mxu0 %v1186
        %v1387 = vpop.f32.mrf.mxu0
        %v1388 = vadd.f32 0.0, %v1387
        %1389 = vmatmul.f32.gmra.mxu0 %v1188
        %v1390 = vpop.f32.mrf.mxu0
        %v1391 = vadd.f32 0.0, %v1390
        %1392 = vmatmul.f32.gmra.mxu0 %v1190
        %v1393 = vpop.f32.mrf.mxu0
        %v1394 = vadd.f32 0.0, %v1393
        %1395 = vmatmul.f32.gmra.mxu0 %v1192
        %v1396 = vpop.f32.mrf.mxu0
        %v1397 = vadd.f32 0.0, %v1396
        %1398 = vmatmul.f32.gmra.mxu0 %v1194
        %v1399 = vpop.f32.mrf.mxu0
        %v1400 = vadd.f32 0.0, %v1399
        %1401 = vmatmul.f32.gmra.mxu0 %v1196
        %v1402 = vpop.f32.mrf.mxu0
        %v1403 = vadd.f32 0.0, %v1402
        %1404 = vmatmul.f32.gmra.mxu0 %v1198
        %v1405 = vpop.f32.mrf.mxu0
        %v1406 = vadd.f32 0.0, %v1405
        %1407 = vmatmul.f32.gmra.mxu0 %v1200
        %v1408 = vpop.f32.mrf.mxu0
        %v1409 = vadd.f32 0.0, %v1408
        %1410 = vdwg.mxu0
        %1411 = vmatpush.msra.mxu0 %v1295
        %1412 = vmatpush.msra.mxu0 %v1292
        %1413 = vmatpush.msra.mxu0 %v1289
        %1414 = vmatpush.msra.mxu0 %v1286
        %1415 = vmatpush.msra.mxu0 %v1283
        %1416 = vmatpush.msra.mxu0 %v1280
        %1417 = vmatpush.msra.mxu0 %v1277
        %1418 = vmatpush.msra.mxu0 %v1274
        %1419 = vmatpush.msra.mxu0 %v1271
        %1420 = vmatpush.msra.mxu0 %v1268
        %1421 = vmatpush.msra.mxu0 %v1265
        %1422 = vmatpush.msra.mxu0 %v1262
        %1423 = vmatpush.msra.mxu0 %v1259
        %1424 = vmatpush.msra.mxu0 %v1256
        %1425 = vmatpush.msra.mxu0 %v1253
        %1426 = vmatpush.msra.mxu0 %v1250
        %1427 = vmatmul.f32.gmra.mxu0 %v1139
        %v1428 = vpop.f32.mrf.mxu0
        %v1429 = vadd.f32 %v1316, %v1428
        %1430 = vmatmul.f32.gmra.mxu0 %v1141
        %v1431 = vpop.f32.mrf.mxu0
        %v1432 = vadd.f32 %v1319, %v1431
        %1433 = vmatmul.f32.gmra.mxu0 %v1143
        %v1434 = vpop.f32.mrf.mxu0
        %v1435 = vadd.f32 %v1322, %v1434
        %1436 = vmatmul.f32.gmra.mxu0 %v1145
        %v1437 = vpop.f32.mrf.mxu0
        %v1438 = vadd.f32 %v1325, %v1437
        %1439 = vmatmul.f32.gmra.mxu0 %v1147
        %v1440 = vpop.f32.mrf.mxu0
        %v1441 = vadd.f32 %v1328, %v1440
        %1442 = vmatmul.f32.gmra.mxu0 %v1149
        %v1443 = vpop.f32.mrf.mxu0
        %v1444 = vadd.f32 %v1331, %v1443
        %1445 = vmatmul.f32.gmra.mxu0 %v1151
        %v1446 = vpop.f32.mrf.mxu0
        %v1447 = vadd.f32 %v1334, %v1446
        %1448 = vmatmul.f32.gmra.mxu0 %v1153
        %v1449 = vpop.f32.mrf.mxu0
        %v1450 = vadd.f32 %v1337, %v1449
        %1451 = vmatmul.f32.gmra.mxu0 %v1155
        %v1452 = vpop.f32.mrf.mxu0
        %v1453 = vadd.f32 %v1340, %v1452
        %1454 = vmatmul.f32.gmra.mxu0 %v1157
        %v1455 = vpop.f32.mrf.mxu0
        %v1456 = vadd.f32 %v1343, %v1455
        %1457 = vmatmul.f32.gmra.mxu0 %v1159
        %v1458 = vpop.f32.mrf.mxu0
        %v1459 = vadd.f32 %v1346, %v1458
        %1460 = vmatmul.f32.gmra.mxu0 %v1161
        %v1461 = vpop.f32.mrf.mxu0
        %v1462 = vadd.f32 %v1349, %v1461
        %1463 = vmatmul.f32.gmra.mxu0 %v1163
        %v1464 = vpop.f32.mrf.mxu0
        %v1465 = vadd.f32 %v1352, %v1464
        %1466 = vmatmul.f32.gmra.mxu0 %v1165
        %v1467 = vpop.f32.mrf.mxu0
        %v1468 = vadd.f32 %v1355, %v1467
        %1469 = vmatmul.f32.gmra.mxu0 %v1167
        %v1470 = vpop.f32.mrf.mxu0
        %v1471 = vadd.f32 %v1358, %v1470
        %1472 = vmatmul.f32.gmra.mxu0 %v1169
        %v1473 = vpop.f32.mrf.mxu0
        %v1474 = vadd.f32 %v1361, %v1473
        %1475 = vmatmul.f32.gmra.mxu0 %v1171
        %v1476 = vpop.f32.mrf.mxu0
        %v1477 = vadd.f32 %v1364, %v1476
        %1478 = vmatmul.f32.gmra.mxu0 %v1173
        %v1479 = vpop.f32.mrf.mxu0
        %v1480 = vadd.f32 %v1367, %v1479
        %1481 = vmatmul.f32.gmra.mxu0 %v1175
        %v1482 = vpop.f32.mrf.mxu0
        %v1483 = vadd.f32 %v1370, %v1482
        %1484 = vmatmul.f32.gmra.mxu0 %v1177
        %v1485 = vpop.f32.mrf.mxu0
        %v1486 = vadd.f32 %v1373, %v1485
        %1487 = vmatmul.f32.gmra.mxu0 %v1179
        %v1488 = vpop.f32.mrf.mxu0
        %v1489 = vadd.f32 %v1376, %v1488
        %1490 = vmatmul.f32.gmra.mxu0 %v1181
        %v1491 = vpop.f32.mrf.mxu0
        %v1492 = vadd.f32 %v1379, %v1491
        %1493 = vmatmul.f32.gmra.mxu0 %v1183
        %v1494 = vpop.f32.mrf.mxu0
        %v1495 = vadd.f32 %v1382, %v1494
        %1496 = vmatmul.f32.gmra.mxu0 %v1185
        %v1497 = vpop.f32.mrf.mxu0
        %v1498 = vadd.f32 %v1385, %v1497
        %1499 = vmatmul.f32.gmra.mxu0 %v1187
        %v1500 = vpop.f32.mrf.mxu0
        %v1501 = vadd.f32 %v1388, %v1500
        %1502 = vmatmul.f32.gmra.mxu0 %v1189
        %v1503 = vpop.f32.mrf.mxu0
        %v1504 = vadd.f32 %v1391, %v1503
        %1505 = vmatmul.f32.gmra.mxu0 %v1191
        %v1506 = vpop.f32.mrf.mxu0
        %v1507 = vadd.f32 %v1394, %v1506
        %1508 = vmatmul.f32.gmra.mxu0 %v1193
        %v1509 = vpop.f32.mrf.mxu0
        %v1510 = vadd.f32 %v1397, %v1509
        %1511 = vmatmul.f32.gmra.mxu0 %v1195
        %v1512 = vpop.f32.mrf.mxu0
        %v1513 = vadd.f32 %v1400, %v1512
        %1514 = vmatmul.f32.gmra.mxu0 %v1197
        %v1515 = vpop.f32.mrf.mxu0
        %v1516 = vadd.f32 %v1403, %v1515
        %1517 = vmatmul.f32.gmra.mxu0 %v1199
        %v1518 = vpop.f32.mrf.mxu0
        %v1519 = vadd.f32 %v1406, %v1518
        %1520 = vmatmul.f32.gmra.mxu0 %v1201
        %v1521 = vpop.f32.mrf.mxu0
        %v1522 = vadd.f32 %v1409, %v1521
        %1523 = vdwg.mxu0
        %1524 = vmatpush.msra.mxu0 %v1248
        %1525 = vmatpush.msra.mxu0 %v1245
        %1526 = vmatpush.msra.mxu0 %v1242
        %1527 = vmatpush.msra.mxu0 %v1239
        %1528 = vmatpush.msra.mxu0 %v1236
        %1529 = vmatpush.msra.mxu0 %v1233
        %1530 = vmatpush.msra.mxu0 %v1230
        %1531 = vmatpush.msra.mxu0 %v1227
        %1532 = vmatpush.msra.mxu0 %v1224
        %1533 = vmatpush.msra.mxu0 %v1221
        %1534 = vmatpush.msra.mxu0 %v1218
        %1535 = vmatpush.msra.mxu0 %v1215
        %1536 = vmatpush.msra.mxu0 %v1212
        %1537 = vmatpush.msra.mxu0 %v1209
        %1538 = vmatpush.msra.mxu0 %v1206
        %1539 = vmatpush.msra.mxu0 %v1203
        %1540 = vmatmul.f32.gmra.mxu0 %v1138
        %v1541 = vpop.f32.mrf.mxu0
        %v1542 = vadd.f32 0.0, %v1541
        %1543 = vmatmul.f32.gmra.mxu0 %v1140
        %v1544 = vpop.f32.mrf.mxu0
        %v1545 = vadd.f32 0.0, %v1544
        %1546 = vmatmul.f32.gmra.mxu0 %v1142
        %v1547 = vpop.f32.mrf.mxu0
        %v1548 = vadd.f32 0.0, %v1547
        %1549 = vmatmul.f32.gmra.mxu0 %v1144
        %v1550 = vpop.f32.mrf.mxu0
        %v1551 = vadd.f32 0.0, %v1550
        %1552 = vmatmul.f32.gmra.mxu0 %v1146
        %v1553 = vpop.f32.mrf.mxu0
        %v1554 = vadd.f32 0.0, %v1553
        %1555 = vmatmul.f32.gmra.mxu0 %v1148
        %v1556 = vpop.f32.mrf.mxu0
        %v1557 = vadd.f32 0.0, %v1556
        %1558 = vmatmul.f32.gmra.mxu0 %v1150
        %v1559 = vpop.f32.mrf.mxu0
        %v1560 = vadd.f32 0.0, %v1559
        %1561 = vmatmul.f32.gmra.mxu0 %v1152
        %v1562 = vpop.f32.mrf.mxu0
        %v1563 = vadd.f32 0.0, %v1562
        %1564 = vmatmul.f32.gmra.mxu0 %v1154
        %v1565 = vpop.f32.mrf.mxu0
        %v1566 = vadd.f32 0.0, %v1565
        %1567 = vmatmul.f32.gmra.mxu0 %v1156
        %v1568 = vpop.f32.mrf.mxu0
        %v1569 = vadd.f32 0.0, %v1568
        %1570 = vmatmul.f32.gmra.mxu0 %v1158
        %v1571 = vpop.f32.mrf.mxu0
        %v1572 = vadd.f32 0.0, %v1571
        %1573 = vmatmul.f32.gmra.mxu0 %v1160
        %v1574 = vpop.f32.mrf.mxu0
        %v1575 = vadd.f32 0.0, %v1574
        %1576 = vmatmul.f32.gmra.mxu0 %v1162
        %v1577 = vpop.f32.mrf.mxu0
        %v1578 = vadd.f32 0.0, %v1577
        %1579 = vmatmul.f32.gmra.mxu0 %v1164
        %v1580 = vpop.f32.mrf.mxu0
        %v1581 = vadd.f32 0.0, %v1580
        %1582 = vmatmul.f32.gmra.mxu0 %v1166
        %v1583 = vpop.f32.mrf.mxu0
        %v1584 = vadd.f32 0.0, %v1583
        %1585 = vmatmul.f32.gmra.mxu0 %v1168
        %v1586 = vpop.f32.mrf.mxu0
        %v1587 = vadd.f32 0.0, %v1586
        %1588 = vmatmul.f32.gmra.mxu0 %v1170
        %v1589 = vpop.f32.mrf.mxu0
        %v1590 = vadd.f32 0.0, %v1589
        %1591 = vmatmul.f32.gmra.mxu0 %v1172
        %v1592 = vpop.f32.mrf.mxu0
        %v1593 = vadd.f32 0.0, %v1592
        %1594 = vmatmul.f32.gmra.mxu0 %v1174
        %v1595 = vpop.f32.mrf.mxu0
        %v1596 = vadd.f32 0.0, %v1595
        %1597 = vmatmul.f32.gmra.mxu0 %v1176
        %v1598 = vpop.f32.mrf.mxu0
        %v1599 = vadd.f32 0.0, %v1598
        %1600 = vmatmul.f32.gmra.mxu0 %v1178
        %v1601 = vpop.f32.mrf.mxu0
        %v1602 = vadd.f32 0.0, %v1601
        %1603 = vmatmul.f32.gmra.mxu0 %v1180
        %v1604 = vpop.f32.mrf.mxu0
        %v1605 = vadd.f32 0.0, %v1604
        %1606 = vmatmul.f32.gmra.mxu0 %v1182
        %v1607 = vpop.f32.mrf.mxu0
        %v1608 = vadd.f32 0.0, %v1607
        %1609 = vmatmul.f32.gmra.mxu0 %v1184
        %v1610 = vpop.f32.mrf.mxu0
        %v1611 = vadd.f32 0.0, %v1610
        %1612 = vmatmul.f32.gmra.mxu0 %v1186
        %v1613 = vpop.f32.mrf.mxu0
        %v1614 = vadd.f32 0.0, %v1613
        %1615 = vmatmul.f32.gmra.mxu0 %v1188
        %v1616 = vpop.f32.mrf.mxu0
        %v1617 = vadd.f32 0.0, %v1616
        %1618 = vmatmul.f32.gmra.mxu0 %v1190
        %v1619 = vpop.f32.mrf.mxu0
        %v1620 = vadd.f32 0.0, %v1619
        %1621 = vmatmul.f32.gmra.mxu0 %v1192
        %v1622 = vpop.f32.mrf.mxu0
        %v1623 = vadd.f32 0.0, %v1622
        %1624 = vmatmul.f32.gmra.mxu0 %v1194
        %v1625 = vpop.f32.mrf.mxu0
        %v1626 = vadd.f32 0.0, %v1625
        %1627 = vmatmul.f32.gmra.mxu0 %v1196
        %v1628 = vpop.f32.mrf.mxu0
        %v1629 = vadd.f32 0.0, %v1628
        %1630 = vmatmul.f32.gmra.mxu0 %v1198
        %v1631 = vpop.f32.mrf.mxu0
        %v1632 = vadd.f32 0.0, %v1631
        %1633 = vmatmul.f32.gmra.mxu0 %v1200
        %v1634 = vpop.f32.mrf.mxu0
        %v1635 = vadd.f32 0.0, %v1634
        %1636 = vdwg.mxu0
        %1637 = vmatpush.msra.mxu0 %v1296
        %1638 = vmatpush.msra.mxu0 %v1293
        %1639 = vmatpush.msra.mxu0 %v1290
        %1640 = vmatpush.msra.mxu0 %v1287
        %1641 = vmatpush.msra.mxu0 %v1284
        %1642 = vmatpush.msra.mxu0 %v1281
        %1643 = vmatpush.msra.mxu0 %v1278
        %1644 = vmatpush.msra.mxu0 %v1275
        %1645 = vmatpush.msra.mxu0 %v1272
        %1646 = vmatpush.msra.mxu0 %v1269
        %1647 = vmatpush.msra.mxu0 %v1266
        %1648 = vmatpush.msra.mxu0 %v1263
        %1649 = vmatpush.msra.mxu0 %v1260
        %1650 = vmatpush.msra.mxu0 %v1257
        %1651 = vmatpush.msra.mxu0 %v1254
        %1652 = vmatpush.msra.mxu0 %v1251
        %1653 = vmatmul.f32.gmra.mxu0 %v1139
        %v1654 = vpop.f32.mrf.mxu0
        %v1655 = vadd.f32 %v1542, %v1654
        %1656 = vmatmul.f32.gmra.mxu0 %v1141
        %v1657 = vpop.f32.mrf.mxu0
        %v1658 = vadd.f32 %v1545, %v1657
        %1659 = vmatmul.f32.gmra.mxu0 %v1143
        %v1660 = vpop.f32.mrf.mxu0
        %v1661 = vadd.f32 %v1548, %v1660
        %1662 = vmatmul.f32.gmra.mxu0 %v1145
        %v1663 = vpop.f32.mrf.mxu0
        %v1664 = vadd.f32 %v1551, %v1663
        %1665 = vmatmul.f32.gmra.mxu0 %v1147
        %v1666 = vpop.f32.mrf.mxu0
        %v1667 = vadd.f32 %v1554, %v1666
        %1668 = vmatmul.f32.gmra.mxu0 %v1149
        %v1669 = vpop.f32.mrf.mxu0
        %v1670 = vadd.f32 %v1557, %v1669
        %1671 = vmatmul.f32.gmra.mxu0 %v1151
        %v1672 = vpop.f32.mrf.mxu0
        %v1673 = vadd.f32 %v1560, %v1672
        %1674 = vmatmul.f32.gmra.mxu0 %v1153
        %v1675 = vpop.f32.mrf.mxu0
        %v1676 = vadd.f32 %v1563, %v1675
        %1677 = vmatmul.f32.gmra.mxu0 %v1155
        %v1678 = vpop.f32.mrf.mxu0
        %v1679 = vadd.f32 %v1566, %v1678
        %1680 = vmatmul.f32.gmra.mxu0 %v1157
        %v1681 = vpop.f32.mrf.mxu0
        %v1682 = vadd.f32 %v1569, %v1681
        %1683 = vmatmul.f32.gmra.mxu0 %v1159
        %v1684 = vpop.f32.mrf.mxu0
        %v1685 = vadd.f32 %v1572, %v1684
        %1686 = vmatmul.f32.gmra.mxu0 %v1161
        %v1687 = vpop.f32.mrf.mxu0
        %v1688 = vadd.f32 %v1575, %v1687
        %1689 = vmatmul.f32.gmra.mxu0 %v1163
        %v1690 = vpop.f32.mrf.mxu0
        %v1691 = vadd.f32 %v1578, %v1690
        %1692 = vmatmul.f32.gmra.mxu0 %v1165
        %v1693 = vpop.f32.mrf.mxu0
        %v1694 = vadd.f32 %v1581, %v1693
        %1695 = vmatmul.f32.gmra.mxu0 %v1167
        %v1696 = vpop.f32.mrf.mxu0
        %v1697 = vadd.f32 %v1584, %v1696
        %1698 = vmatmul.f32.gmra.mxu0 %v1169
        %v1699 = vpop.f32.mrf.mxu0
        %v1700 = vadd.f32 %v1587, %v1699
        %1701 = vmatmul.f32.gmra.mxu0 %v1171
        %v1702 = vpop.f32.mrf.mxu0
        %v1703 = vadd.f32 %v1590, %v1702
        %1704 = vmatmul.f32.gmra.mxu0 %v1173
        %v1705 = vpop.f32.mrf.mxu0
        %v1706 = vadd.f32 %v1593, %v1705
        %1707 = vmatmul.f32.gmra.mxu0 %v1175
        %v1708 = vpop.f32.mrf.mxu0
        %v1709 = vadd.f32 %v1596, %v1708
        %1710 = vmatmul.f32.gmra.mxu0 %v1177
        %v1711 = vpop.f32.mrf.mxu0
        %v1712 = vadd.f32 %v1599, %v1711
        %1713 = vmatmul.f32.gmra.mxu0 %v1179
        %v1714 = vpop.f32.mrf.mxu0
        %v1715 = vadd.f32 %v1602, %v1714
        %1716 = vmatmul.f32.gmra.mxu0 %v1181
        %v1717 = vpop.f32.mrf.mxu0
        %v1718 = vadd.f32 %v1605, %v1717
        %1719 = vmatmul.f32.gmra.mxu0 %v1183
        %v1720 = vpop.f32.mrf.mxu0
        %v1721 = vadd.f32 %v1608, %v1720
        %1722 = vmatmul.f32.gmra.mxu0 %v1185
        %v1723 = vpop.f32.mrf.mxu0
        %v1724 = vadd.f32 %v1611, %v1723
        %1725 = vmatmul.f32.gmra.mxu0 %v1187
        %v1726 = vpop.f32.mrf.mxu0
        %v1727 = vadd.f32 %v1614, %v1726
        %1728 = vmatmul.f32.gmra.mxu0 %v1189
        %v1729 = vpop.f32.mrf.mxu0
        %v1730 = vadd.f32 %v1617, %v1729
        %1731 = vmatmul.f32.gmra.mxu0 %v1191
        %v1732 = vpop.f32.mrf.mxu0
        %v1733 = vadd.f32 %v1620, %v1732
        %1734 = vmatmul.f32.gmra.mxu0 %v1193
        %v1735 = vpop.f32.mrf.mxu0
        %v1736 = vadd.f32 %v1623, %v1735
        %1737 = vmatmul.f32.gmra.mxu0 %v1195
        %v1738 = vpop.f32.mrf.mxu0
        %v1739 = vadd.f32 %v1626, %v1738
        %1740 = vmatmul.f32.gmra.mxu0 %v1197
        %v1741 = vpop.f32.mrf.mxu0
        %v1742 = vadd.f32 %v1629, %v1741
        %1743 = vmatmul.f32.gmra.mxu0 %v1199
        %v1744 = vpop.f32.mrf.mxu0
        %v1745 = vadd.f32 %v1632, %v1744
        %1746 = vmatmul.f32.gmra.mxu0 %v1201
        %v1747 = vpop.f32.mrf.mxu0
        %v1748 = vadd.f32 %v1635, %v1747
        %1749 = vdwg.mxu0
        %1750 = vmatpush.msra.mxu0 %v1249
        %1751 = vmatpush.msra.mxu0 %v1246
        %1752 = vmatpush.msra.mxu0 %v1243
        %1753 = vmatpush.msra.mxu0 %v1240
        %1754 = vmatpush.msra.mxu0 %v1237
        %1755 = vmatpush.msra.mxu0 %v1234
        %1756 = vmatpush.msra.mxu0 %v1231
        %1757 = vmatpush.msra.mxu0 %v1228
        %1758 = vmatpush.msra.mxu0 %v1225
        %1759 = vmatpush.msra.mxu0 %v1222
        %1760 = vmatpush.msra.mxu0 %v1219
        %1761 = vmatpush.msra.mxu0 %v1216
        %1762 = vmatpush.msra.mxu0 %v1213
        %1763 = vmatpush.msra.mxu0 %v1210
        %1764 = vmatpush.msra.mxu0 %v1207
        %1765 = vmatpush.msra.mxu0 %v1204
        %1766 = vmatmul.f32.gmra.mxu0 %v1138
        %v1767 = vpop.f32.mrf.mxu0
        %v1768 = vadd.f32 0.0, %v1767
        %1769 = vmatmul.f32.gmra.mxu0 %v1140
        %v1770 = vpop.f32.mrf.mxu0
        %v1771 = vadd.f32 0.0, %v1770
        %1772 = vmatmul.f32.gmra.mxu0 %v1142
        %v1773 = vpop.f32.mrf.mxu0
        %v1774 = vadd.f32 0.0, %v1773
        %1775 = vmatmul.f32.gmra.mxu0 %v1144
        %v1776 = vpop.f32.mrf.mxu0
        %v1777 = vadd.f32 0.0, %v1776
        %1778 = vmatmul.f32.gmra.mxu0 %v1146
        %v1779 = vpop.f32.mrf.mxu0
        %v1780 = vadd.f32 0.0, %v1779
        %1781 = vmatmul.f32.gmra.mxu0 %v1148
        %v1782 = vpop.f32.mrf.mxu0
        %v1783 = vadd.f32 0.0, %v1782
        %1784 = vmatmul.f32.gmra.mxu0 %v1150
        %v1785 = vpop.f32.mrf.mxu0
        %v1786 = vadd.f32 0.0, %v1785
        %1787 = vmatmul.f32.gmra.mxu0 %v1152
        %v1788 = vpop.f32.mrf.mxu0
        %v1789 = vadd.f32 0.0, %v1788
        %1790 = vmatmul.f32.gmra.mxu0 %v1154
        %v1791 = vpop.f32.mrf.mxu0
        %v1792 = vadd.f32 0.0, %v1791
        %1793 = vmatmul.f32.gmra.mxu0 %v1156
        %v1794 = vpop.f32.mrf.mxu0
        %v1795 = vadd.f32 0.0, %v1794
        %1796 = vmatmul.f32.gmra.mxu0 %v1158
        %v1797 = vpop.f32.mrf.mxu0
        %v1798 = vadd.f32 0.0, %v1797
        %1799 = vmatmul.f32.gmra.mxu0 %v1160
        %v1800 = vpop.f32.mrf.mxu0
        %v1801 = vadd.f32 0.0, %v1800
        %1802 = vmatmul.f32.gmra.mxu0 %v1162
        %v1803 = vpop.f32.mrf.mxu0
        %v1804 = vadd.f32 0.0, %v1803
        %1805 = vmatmul.f32.gmra.mxu0 %v1164
        %v1806 = vpop.f32.mrf.mxu0
        %v1807 = vadd.f32 0.0, %v1806
        %1808 = vmatmul.f32.gmra.mxu0 %v1166
        %v1809 = vpop.f32.mrf.mxu0
        %v1810 = vadd.f32 0.0, %v1809
        %1811 = vmatmul.f32.gmra.mxu0 %v1168
        %v1812 = vpop.f32.mrf.mxu0
        %v1813 = vadd.f32 0.0, %v1812
        %1814 = vmatmul.f32.gmra.mxu0 %v1170
        %v1815 = vpop.f32.mrf.mxu0
        %v1816 = vadd.f32 0.0, %v1815
        %1817 = vmatmul.f32.gmra.mxu0 %v1172
        %v1818 = vpop.f32.mrf.mxu0
        %v1819 = vadd.f32 0.0, %v1818
        %1820 = vmatmul.f32.gmra.mxu0 %v1174
        %v1821 = vpop.f32.mrf.mxu0
        %v1822 = vadd.f32 0.0, %v1821
        %1823 = vmatmul.f32.gmra.mxu0 %v1176
        %v1824 = vpop.f32.mrf.mxu0
        %v1825 = vadd.f32 0.0, %v1824
        %1826 = vmatmul.f32.gmra.mxu0 %v1178
        %v1827 = vpop.f32.mrf.mxu0
        %v1828 = vadd.f32 0.0, %v1827
        %1829 = vmatmul.f32.gmra.mxu0 %v1180
        %v1830 = vpop.f32.mrf.mxu0
        %v1831 = vadd.f32 0.0, %v1830
        %1832 = vmatmul.f32.gmra.mxu0 %v1182
        %v1833 = vpop.f32.mrf.mxu0
        %v1834 = vadd.f32 0.0, %v1833
        %1835 = vmatmul.f32.gmra.mxu0 %v1184
        %v1836 = vpop.f32.mrf.mxu0
        %v1837 = vadd.f32 0.0, %v1836
        %1838 = vmatmul.f32.gmra.mxu0 %v1186
        %v1839 = vpop.f32.mrf.mxu0
        %v1840 = vadd.f32 0.0, %v1839
        %1841 = vmatmul.f32.gmra.mxu0 %v1188
        %v1842 = vpop.f32.mrf.mxu0
        %v1843 = vadd.f32 0.0, %v1842
        %1844 = vmatmul.f32.gmra.mxu0 %v1190
        %v1845 = vpop.f32.mrf.mxu0
        %v1846 = vadd.f32 0.0, %v1845
        %1847 = vmatmul.f32.gmra.mxu0 %v1192
        %v1848 = vpop.f32.mrf.mxu0
        %v1849 = vadd.f32 0.0, %v1848
        %1850 = vmatmul.f32.gmra.mxu0 %v1194
        %v1851 = vpop.f32.mrf.mxu0
        %v1852 = vadd.f32 0.0, %v1851
        %1853 = vmatmul.f32.gmra.mxu0 %v1196
        %v1854 = vpop.f32.mrf.mxu0
        %v1855 = vadd.f32 0.0, %v1854
        %1856 = vmatmul.f32.gmra.mxu0 %v1198
        %v1857 = vpop.f32.mrf.mxu0
        %v1858 = vadd.f32 0.0, %v1857
        %1859 = vmatmul.f32.gmra.mxu0 %v1200
        %v1860 = vpop.f32.mrf.mxu0
        %v1861 = vadd.f32 0.0, %v1860
        %1862 = vdwg.mxu0
        %1863 = vmatpush.msra.mxu0 %v1297
        %1864 = vmatpush.msra.mxu0 %v1294
        %1865 = vmatpush.msra.mxu0 %v1291
        %1866 = vmatpush.msra.mxu0 %v1288
        %1867 = vmatpush.msra.mxu0 %v1285
        %1868 = vmatpush.msra.mxu0 %v1282
        %1869 = vmatpush.msra.mxu0 %v1279
        %1870 = vmatpush.msra.mxu0 %v1276
        %1871 = vmatpush.msra.mxu0 %v1273
        %1872 = vmatpush.msra.mxu0 %v1270
        %1873 = vmatpush.msra.mxu0 %v1267
        %1874 = vmatpush.msra.mxu0 %v1264
        %1875 = vmatpush.msra.mxu0 %v1261
        %1876 = vmatpush.msra.mxu0 %v1258
        %1877 = vmatpush.msra.mxu0 %v1255
        %1878 = vmatpush.msra.mxu0 %v1252
        %1879 = vmatmul.f32.gmra.mxu0 %v1139
        %v1880 = vpop.f32.mrf.mxu0
        %v1881 = vadd.f32 %v1768, %v1880
        %1882 = vmatmul.f32.gmra.mxu0 %v1141
        %v1883 = vpop.f32.mrf.mxu0
        %v1884 = vadd.f32 %v1771, %v1883
        %1885 = vmatmul.f32.gmra.mxu0 %v1143
        %v1886 = vpop.f32.mrf.mxu0
        %v1887 = vadd.f32 %v1774, %v1886
        %1888 = vmatmul.f32.gmra.mxu0 %v1145
        %v1889 = vpop.f32.mrf.mxu0
        %v1890 = vadd.f32 %v1777, %v1889
        %1891 = vmatmul.f32.gmra.mxu0 %v1147
        %v1892 = vpop.f32.mrf.mxu0
        %v1893 = vadd.f32 %v1780, %v1892
        %1894 = vmatmul.f32.gmra.mxu0 %v1149
        %v1895 = vpop.f32.mrf.mxu0
        %v1896 = vadd.f32 %v1783, %v1895
        %1897 = vmatmul.f32.gmra.mxu0 %v1151
        %v1898 = vpop.f32.mrf.mxu0
        %v1899 = vadd.f32 %v1786, %v1898
        %1900 = vmatmul.f32.gmra.mxu0 %v1153
        %v1901 = vpop.f32.mrf.mxu0
        %v1902 = vadd.f32 %v1789, %v1901
        %1903 = vmatmul.f32.gmra.mxu0 %v1155
        %v1904 = vpop.f32.mrf.mxu0
        %v1905 = vadd.f32 %v1792, %v1904
        %1906 = vmatmul.f32.gmra.mxu0 %v1157
        %v1907 = vpop.f32.mrf.mxu0
        %v1908 = vadd.f32 %v1795, %v1907
        %1909 = vmatmul.f32.gmra.mxu0 %v1159
        %v1910 = vpop.f32.mrf.mxu0
        %v1911 = vadd.f32 %v1798, %v1910
        %1912 = vmatmul.f32.gmra.mxu0 %v1161
        %v1913 = vpop.f32.mrf.mxu0
        %v1914 = vadd.f32 %v1801, %v1913
        %1915 = vmatmul.f32.gmra.mxu0 %v1163
        %v1916 = vpop.f32.mrf.mxu0
        %v1917 = vadd.f32 %v1804, %v1916
        %1918 = vmatmul.f32.gmra.mxu0 %v1165
        %v1919 = vpop.f32.mrf.mxu0
        %v1920 = vadd.f32 %v1807, %v1919
        %1921 = vmatmul.f32.gmra.mxu0 %v1167
        %v1922 = vpop.f32.mrf.mxu0
        %v1923 = vadd.f32 %v1810, %v1922
        %1924 = vmatmul.f32.gmra.mxu0 %v1169
        %v1925 = vpop.f32.mrf.mxu0
        %v1926 = vadd.f32 %v1813, %v1925
        %1927 = vmatmul.f32.gmra.mxu0 %v1171
        %v1928 = vpop.f32.mrf.mxu0
        %v1929 = vadd.f32 %v1816, %v1928
        %1930 = vmatmul.f32.gmra.mxu0 %v1173
        %v1931 = vpop.f32.mrf.mxu0
        %v1932 = vadd.f32 %v1819, %v1931
        %1933 = vmatmul.f32.gmra.mxu0 %v1175
        %v1934 = vpop.f32.mrf.mxu0
        %v1935 = vadd.f32 %v1822, %v1934
        %1936 = vmatmul.f32.gmra.mxu0 %v1177
        %v1937 = vpop.f32.mrf.mxu0
        %v1938 = vadd.f32 %v1825, %v1937
        %1939 = vmatmul.f32.gmra.mxu0 %v1179
        %v1940 = vpop.f32.mrf.mxu0
        %v1941 = vadd.f32 %v1828, %v1940
        %1942 = vmatmul.f32.gmra.mxu0 %v1181
        %v1943 = vpop.f32.mrf.mxu0
        %v1944 = vadd.f32 %v1831, %v1943
        %1945 = vmatmul.f32.gmra.mxu0 %v1183
        %v1946 = vpop.f32.mrf.mxu0
        %v1947 = vadd.f32 %v1834, %v1946
        %1948 = vmatmul.f32.gmra.mxu0 %v1185
        %v1949 = vpop.f32.mrf.mxu0
        %v1950 = vadd.f32 %v1837, %v1949
        %1951 = vmatmul.f32.gmra.mxu0 %v1187
        %v1952 = vpop.f32.mrf.mxu0
        %v1953 = vadd.f32 %v1840, %v1952
        %1954 = vmatmul.f32.gmra.mxu0 %v1189
        %v1955 = vpop.f32.mrf.mxu0
        %v1956 = vadd.f32 %v1843, %v1955
        %1957 = vmatmul.f32.gmra.mxu0 %v1191
        %v1958 = vpop.f32.mrf.mxu0
        %v1959 = vadd.f32 %v1846, %v1958
        %1960 = vmatmul.f32.gmra.mxu0 %v1193
        %v1961 = vpop.f32.mrf.mxu0
        %v1962 = vadd.f32 %v1849, %v1961
        %1963 = vmatmul.f32.gmra.mxu0 %v1195
        %v1964 = vpop.f32.mrf.mxu0
        %v1965 = vadd.f32 %v1852, %v1964
        %1966 = vmatmul.f32.gmra.mxu0 %v1197
        %v1967 = vpop.f32.mrf.mxu0
        %v1968 = vadd.f32 %v1855, %v1967
        %1969 = vmatmul.f32.gmra.mxu0 %v1199
        %v1970 = vpop.f32.mrf.mxu0
        %v1971 = vadd.f32 %v1858, %v1970
        %1972 = vmatmul.f32.gmra.mxu0 %v1201
        %v1973 = vpop.f32.mrf.mxu0
        %v1974 = vadd.f32 %v1861, %v1973
        %1975 = vdwg.mxu0
        %v1976 = vld [vmem:[%s379] sm:$0xff]
        %v1977 = vld [vmem:[%s379 + $0x8] sm:$0xff]
        %v1978 = vld [vmem:[%s379 + $0x10] sm:$0xff]
        %v1979 = vld [vmem:[%s379 + $0x18] sm:$0xff]
        %v1980 = vld [vmem:[%s379 + $0x20] sm:$0xff]
        %v1981 = vld [vmem:[%s379 + $0x28] sm:$0xff]
        %v1982 = vld [vmem:[%s379 + $0x30] sm:$0xff]
        %v1983 = vld [vmem:[%s379 + $0x38] sm:$0xff]
        %v1984 = vld [vmem:[%s379 + $0x40] sm:$0xff]
        %v1985 = vld [vmem:[%s379 + $0x48] sm:$0xff]
        %v1986 = vld [vmem:[%s379 + $0x50] sm:$0xff]
        %v1987 = vld [vmem:[%s379 + $0x58] sm:$0xff]
        %v1988 = vld [vmem:[%s379 + $0x60] sm:$0xff]
        %v1989 = vld [vmem:[%s379 + $0x68] sm:$0xff]
        %v1990 = vld [vmem:[%s379 + $0x70] sm:$0xff]
        %v1991 = vld [vmem:[%s379 + $0x78] sm:$0xff]
        %v1992 = vld [vmem:[%s379 + $0x80] sm:$0xff]
        %v1993 = vld [vmem:[%s379 + $0x88] sm:$0xff]
        %v1994 = vld [vmem:[%s379 + $0x90] sm:$0xff]
        %v1995 = vld [vmem:[%s379 + $0x98] sm:$0xff]
        %v1996 = vld [vmem:[%s379 + $0xa0] sm:$0xff]
        %v1997 = vld [vmem:[%s379 + $0xa8] sm:$0xff]
        %v1998 = vld [vmem:[%s379 + $0xb0] sm:$0xff]
        %v1999 = vld [vmem:[%s379 + $0xb8] sm:$0xff]
        %v2000 = vld [vmem:[%s379 + $0xc0] sm:$0xff]
        %v2001 = vld [vmem:[%s379 + $0xc8] sm:$0xff]
        %v2002 = vld [vmem:[%s379 + $0xd0] sm:$0xff]
        %v2003 = vld [vmem:[%s379 + $0xd8] sm:$0xff]
        %v2004 = vld [vmem:[%s379 + $0xe0] sm:$0xff]
        %v2005 = vld [vmem:[%s379 + $0xe8] sm:$0xff]
        %v2006 = vld [vmem:[%s379 + $0xf0] sm:$0xff]
        %v2007 = vld [vmem:[%s379 + $0xf8] sm:$0xff]
        %v2008 = vld [vmem:[%s389] sm:$0xff]
        %v2009 = vld [vmem:[%s389 + $0x8] sm:$0xff]
        %v2010 = vld [vmem:[%s389 + $0x10] sm:$0xff]
        %v2011 = vld [vmem:[%s389 + $0x18] sm:$0xff]
        %v2012 = vld [vmem:[%s389 + $0x20] sm:$0xff]
        %v2013 = vld [vmem:[%s389 + $0x28] sm:$0xff]
        %v2014 = vld [vmem:[%s389 + $0x30] sm:$0xff]
        %v2015 = vld [vmem:[%s389 + $0x38] sm:$0xff]
        %v2016 = vld [vmem:[%s389 + $0x40] sm:$0xff]
        %v2017 = vld [vmem:[%s389 + $0x48] sm:$0xff]
        %v2018 = vld [vmem:[%s389 + $0x50] sm:$0xff]
        %v2019 = vld [vmem:[%s389 + $0x58] sm:$0xff]
        %v2020 = vld [vmem:[%s389 + $0x60] sm:$0xff]
        %v2021 = vld [vmem:[%s389 + $0x68] sm:$0xff]
        %v2022 = vld [vmem:[%s389 + $0x70] sm:$0xff]
        %v2023 = vld [vmem:[%s389 + $0x78] sm:$0xff]
        %v2024 = vld [vmem:[%s389 + $0x80] sm:$0xff]
        %v2025 = vld [vmem:[%s389 + $0x88] sm:$0xff]
        %v2026 = vld [vmem:[%s389 + $0x90] sm:$0xff]
        %v2027 = vld [vmem:[%s389 + $0x98] sm:$0xff]
        %v2028 = vld [vmem:[%s389 + $0xa0] sm:$0xff]
        %v2029 = vld [vmem:[%s389 + $0xa8] sm:$0xff]
        %v2030 = vld [vmem:[%s389 + $0xb0] sm:$0xff]
        %v2031 = vld [vmem:[%s389 + $0xb8] sm:$0xff]
        %v2032 = vld [vmem:[%s389 + $0xc0] sm:$0xff]
        %v2033 = vld [vmem:[%s389 + $0xc8] sm:$0xff]
        %v2034 = vld [vmem:[%s389 + $0xd0] sm:$0xff]
        %v2035 = vld [vmem:[%s389 + $0xd8] sm:$0xff]
        %v2036 = vld [vmem:[%s389 + $0xe0] sm:$0xff]
        %v2037 = vld [vmem:[%s389 + $0xe8] sm:$0xff]
        %v2038 = vld [vmem:[%s389 + $0xf0] sm:$0xff]
        %v2039 = vld [vmem:[%s389 + $0xf8] sm:$0xff]
        %v2040 = vmul.f32 %v1429, %v1976
        %v2041 = vmul.f32 %v1432, %v1977
        %v2042 = vmul.f32 %v1435, %v1978
        %v2043 = vmul.f32 %v1438, %v1979
        %v2044 = vmul.f32 %v1441, %v1980
        %v2045 = vmul.f32 %v1444, %v1981
        %v2046 = vmul.f32 %v1447, %v1982
        %v2047 = vmul.f32 %v1450, %v1983
        %v2048 = vmul.f32 %v1453, %v1984
        %v2049 = vmul.f32 %v1456, %v1985
        %v2050 = vmul.f32 %v1459, %v1986
        %v2051 = vmul.f32 %v1462, %v1987
        %v2052 = vmul.f32 %v1465, %v1988
        %v2053 = vmul.f32 %v1468, %v1989
        %v2054 = vmul.f32 %v1471, %v1990
        %v2055 = vmul.f32 %v1474, %v1991
        %v2056 = vmul.f32 %v1477, %v1992
        %v2057 = vmul.f32 %v1480, %v1993
        %v2058 = vmul.f32 %v1483, %v1994
        %v2059 = vmul.f32 %v1486, %v1995
        %v2060 = vmul.f32 %v1489, %v1996
        %v2061 = vmul.f32 %v1492, %v1997
        %v2062 = vmul.f32 %v1495, %v1998
        %v2063 = vmul.f32 %v1498, %v1999
        %v2064 = vmul.f32 %v1501, %v2000
        %v2065 = vmul.f32 %v1504, %v2001
        %v2066 = vmul.f32 %v1507, %v2002
        %v2067 = vmul.f32 %v1510, %v2003
        %v2068 = vmul.f32 %v1513, %v2004
        %v2069 = vmul.f32 %v1516, %v2005
        %v2070 = vmul.f32 %v1519, %v2006
        %v2071 = vmul.f32 %v1522, %v2007
        %2072 = vrot.lane.b32.xlu0 %v1429, 64
        %v2073 = vpop.permute.xlu0 %2072
        %2074 = vrot.lane.b32.xlu0 %v1432, 64
        %v2075 = vpop.permute.xlu0 %2074
        %2076 = vrot.lane.b32.xlu0 %v1435, 64
        %v2077 = vpop.permute.xlu0 %2076
        %2078 = vrot.lane.b32.xlu0 %v1438, 64
        %v2079 = vpop.permute.xlu0 %2078
        %2080 = vrot.lane.b32.xlu0 %v1441, 64
        %v2081 = vpop.permute.xlu0 %2080
        %2082 = vrot.lane.b32.xlu0 %v1444, 64
        %v2083 = vpop.permute.xlu0 %2082
        %2084 = vrot.lane.b32.xlu0 %v1447, 64
        %v2085 = vpop.permute.xlu0 %2084
        %2086 = vrot.lane.b32.xlu0 %v1450, 64
        %v2087 = vpop.permute.xlu0 %2086
        %2088 = vrot.lane.b32.xlu0 %v1453, 64
        %v2089 = vpop.permute.xlu0 %2088
        %2090 = vrot.lane.b32.xlu0 %v1456, 64
        %v2091 = vpop.permute.xlu0 %2090
        %2092 = vrot.lane.b32.xlu0 %v1459, 64
        %v2093 = vpop.permute.xlu0 %2092
        %2094 = vrot.lane.b32.xlu0 %v1462, 64
        %v2095 = vpop.permute.xlu0 %2094
        %2096 = vrot.lane.b32.xlu0 %v1465, 64
        %v2097 = vpop.permute.xlu0 %2096
        %2098 = vrot.lane.b32.xlu0 %v1468, 64
        %v2099 = vpop.permute.xlu0 %2098
        %2100 = vrot.lane.b32.xlu0 %v1471, 64
        %v2101 = vpop.permute.xlu0 %2100
        %2102 = vrot.lane.b32.xlu0 %v1474, 64
        %v2103 = vpop.permute.xlu0 %2102
        %2104 = vrot.lane.b32.xlu0 %v1477, 64
        %v2105 = vpop.permute.xlu0 %2104
        %2106 = vrot.lane.b32.xlu0 %v1480, 64
        %v2107 = vpop.permute.xlu0 %2106
        %2108 = vrot.lane.b32.xlu0 %v1483, 64
        %v2109 = vpop.permute.xlu0 %2108
        %2110 = vrot.lane.b32.xlu0 %v1486, 64
        %v2111 = vpop.permute.xlu0 %2110
        %2112 = vrot.lane.b32.xlu0 %v1489, 64
        %v2113 = vpop.permute.xlu0 %2112
        %2114 = vrot.lane.b32.xlu0 %v1492, 64
        %v2115 = vpop.permute.xlu0 %2114
        %2116 = vrot.lane.b32.xlu0 %v1495, 64
        %v2117 = vpop.permute.xlu0 %2116
        %2118 = vrot.lane.b32.xlu0 %v1498, 64
        %v2119 = vpop.permute.xlu0 %2118
        %2120 = vrot.lane.b32.xlu0 %v1501, 64
        %v2121 = vpop.permute.xlu0 %2120
        %2122 = vrot.lane.b32.xlu0 %v1504, 64
        %v2123 = vpop.permute.xlu0 %2122
        %2124 = vrot.lane.b32.xlu0 %v1507, 64
        %v2125 = vpop.permute.xlu0 %2124
        %2126 = vrot.lane.b32.xlu0 %v1510, 64
        %v2127 = vpop.permute.xlu0 %2126
        %2128 = vrot.lane.b32.xlu0 %v1513, 64
        %v2129 = vpop.permute.xlu0 %2128
        %2130 = vrot.lane.b32.xlu0 %v1516, 64
        %v2131 = vpop.permute.xlu0 %2130
        %2132 = vrot.lane.b32.xlu0 %v1519, 64
        %v2133 = vpop.permute.xlu0 %2132
        %2134 = vrot.lane.b32.xlu0 %v1522, 64
        %v2135 = vpop.permute.xlu0 %2134
        %v2136 = vmul.f32 %v2073, %v2008
        %v2137 = vmul.f32 %v2075, %v2009
        %v2138 = vmul.f32 %v2077, %v2010
        %v2139 = vmul.f32 %v2079, %v2011
        %v2140 = vmul.f32 %v2081, %v2012
        %v2141 = vmul.f32 %v2083, %v2013
        %v2142 = vmul.f32 %v2085, %v2014
        %v2143 = vmul.f32 %v2087, %v2015
        %v2144 = vmul.f32 %v2089, %v2016
        %v2145 = vmul.f32 %v2091, %v2017
        %v2146 = vmul.f32 %v2093, %v2018
        %v2147 = vmul.f32 %v2095, %v2019
        %v2148 = vmul.f32 %v2097, %v2020
        %v2149 = vmul.f32 %v2099, %v2021
        %v2150 = vmul.f32 %v2101, %v2022
        %v2151 = vmul.f32 %v2103, %v2023
        %v2152 = vmul.f32 %v2105, %v2024
        %v2153 = vmul.f32 %v2107, %v2025
        %v2154 = vmul.f32 %v2109, %v2026
        %v2155 = vmul.f32 %v2111, %v2027
        %v2156 = vmul.f32 %v2113, %v2028
        %v2157 = vmul.f32 %v2115, %v2029
        %v2158 = vmul.f32 %v2117, %v2030
        %v2159 = vmul.f32 %v2119, %v2031
        %v2160 = vmul.f32 %v2121, %v2032
        %v2161 = vmul.f32 %v2123, %v2033
        %v2162 = vmul.f32 %v2125, %v2034
        %v2163 = vmul.f32 %v2127, %v2035
        %v2164 = vmul.f32 %v2129, %v2036
        %v2165 = vmul.f32 %v2131, %v2037
        %v2166 = vmul.f32 %v2133, %v2038
        %v2167 = vmul.f32 %v2135, %v2039
        %v2168 = vadd.f32 %v2040, %v2136
        %v2169 = vadd.f32 %v2041, %v2137
        %v2170 = vadd.f32 %v2042, %v2138
        %v2171 = vadd.f32 %v2043, %v2139
        %v2172 = vadd.f32 %v2044, %v2140
        %v2173 = vadd.f32 %v2045, %v2141
        %v2174 = vadd.f32 %v2046, %v2142
        %v2175 = vadd.f32 %v2047, %v2143
        %v2176 = vadd.f32 %v2048, %v2144
        %v2177 = vadd.f32 %v2049, %v2145
        %v2178 = vadd.f32 %v2050, %v2146
        %v2179 = vadd.f32 %v2051, %v2147
        %v2180 = vadd.f32 %v2052, %v2148
        %v2181 = vadd.f32 %v2053, %v2149
        %v2182 = vadd.f32 %v2054, %v2150
        %v2183 = vadd.f32 %v2055, %v2151
        %v2184 = vadd.f32 %v2056, %v2152
        %v2185 = vadd.f32 %v2057, %v2153
        %v2186 = vadd.f32 %v2058, %v2154
        %v2187 = vadd.f32 %v2059, %v2155
        %v2188 = vadd.f32 %v2060, %v2156
        %v2189 = vadd.f32 %v2061, %v2157
        %v2190 = vadd.f32 %v2062, %v2158
        %v2191 = vadd.f32 %v2063, %v2159
        %v2192 = vadd.f32 %v2064, %v2160
        %v2193 = vadd.f32 %v2065, %v2161
        %v2194 = vadd.f32 %v2066, %v2162
        %v2195 = vadd.f32 %v2067, %v2163
        %v2196 = vadd.f32 %v2068, %v2164
        %v2197 = vadd.f32 %v2069, %v2165
        %v2198 = vadd.f32 %v2070, %v2166
        %v2199 = vadd.f32 %v2071, %v2167
        %v2200 = vmul.f32 %v1655, %v1976
        %v2201 = vmul.f32 %v1658, %v1977
        %v2202 = vmul.f32 %v1661, %v1978
        %v2203 = vmul.f32 %v1664, %v1979
        %v2204 = vmul.f32 %v1667, %v1980
        %v2205 = vmul.f32 %v1670, %v1981
        %v2206 = vmul.f32 %v1673, %v1982
        %v2207 = vmul.f32 %v1676, %v1983
        %v2208 = vmul.f32 %v1679, %v1984
        %v2209 = vmul.f32 %v1682, %v1985
        %v2210 = vmul.f32 %v1685, %v1986
        %v2211 = vmul.f32 %v1688, %v1987
        %v2212 = vmul.f32 %v1691, %v1988
        %v2213 = vmul.f32 %v1694, %v1989
        %v2214 = vmul.f32 %v1697, %v1990
        %v2215 = vmul.f32 %v1700, %v1991
        %v2216 = vmul.f32 %v1703, %v1992
        %v2217 = vmul.f32 %v1706, %v1993
        %v2218 = vmul.f32 %v1709, %v1994
        %v2219 = vmul.f32 %v1712, %v1995
        %v2220 = vmul.f32 %v1715, %v1996
        %v2221 = vmul.f32 %v1718, %v1997
        %v2222 = vmul.f32 %v1721, %v1998
        %v2223 = vmul.f32 %v1724, %v1999
        %v2224 = vmul.f32 %v1727, %v2000
        %v2225 = vmul.f32 %v1730, %v2001
        %v2226 = vmul.f32 %v1733, %v2002
        %v2227 = vmul.f32 %v1736, %v2003
        %v2228 = vmul.f32 %v1739, %v2004
        %v2229 = vmul.f32 %v1742, %v2005
        %v2230 = vmul.f32 %v1745, %v2006
        %v2231 = vmul.f32 %v1748, %v2007
        %2232 = vrot.lane.b32.xlu0 %v1655, 64
        %v2233 = vpop.permute.xlu0 %2232
        %2234 = vrot.lane.b32.xlu0 %v1658, 64
        %v2235 = vpop.permute.xlu0 %2234
        %2236 = vrot.lane.b32.xlu0 %v1661, 64
        %v2237 = vpop.permute.xlu0 %2236
        %2238 = vrot.lane.b32.xlu0 %v1664, 64
        %v2239 = vpop.permute.xlu0 %2238
        %2240 = vrot.lane.b32.xlu0 %v1667, 64
        %v2241 = vpop.permute.xlu0 %2240
        %2242 = vrot.lane.b32.xlu0 %v1670, 64
        %v2243 = vpop.permute.xlu0 %2242
        %2244 = vrot.lane.b32.xlu0 %v1673, 64
        %v2245 = vpop.permute.xlu0 %2244
        %2246 = vrot.lane.b32.xlu0 %v1676, 64
        %v2247 = vpop.permute.xlu0 %2246
        %2248 = vrot.lane.b32.xlu0 %v1679, 64
        %v2249 = vpop.permute.xlu0 %2248
        %2250 = vrot.lane.b32.xlu0 %v1682, 64
        %v2251 = vpop.permute.xlu0 %2250
        %2252 = vrot.lane.b32.xlu0 %v1685, 64
        %v2253 = vpop.permute.xlu0 %2252
        %2254 = vrot.lane.b32.xlu0 %v1688, 64
        %v2255 = vpop.permute.xlu0 %2254
        %2256 = vrot.lane.b32.xlu0 %v1691, 64
        %v2257 = vpop.permute.xlu0 %2256
        %2258 = vrot.lane.b32.xlu0 %v1694, 64
        %v2259 = vpop.permute.xlu0 %2258
        %2260 = vrot.lane.b32.xlu0 %v1697, 64
        %v2261 = vpop.permute.xlu0 %2260
        %2262 = vrot.lane.b32.xlu0 %v1700, 64
        %v2263 = vpop.permute.xlu0 %2262
        %2264 = vrot.lane.b32.xlu0 %v1703, 64
        %v2265 = vpop.permute.xlu0 %2264
        %2266 = vrot.lane.b32.xlu0 %v1706, 64
        %v2267 = vpop.permute.xlu0 %2266
        %2268 = vrot.lane.b32.xlu0 %v1709, 64
        %v2269 = vpop.permute.xlu0 %2268
        %2270 = vrot.lane.b32.xlu0 %v1712, 64
        %v2271 = vpop.permute.xlu0 %2270
        %2272 = vrot.lane.b32.xlu0 %v1715, 64
        %v2273 = vpop.permute.xlu0 %2272
        %2274 = vrot.lane.b32.xlu0 %v1718, 64
        %v2275 = vpop.permute.xlu0 %2274
        %2276 = vrot.lane.b32.xlu0 %v1721, 64
        %v2277 = vpop.permute.xlu0 %2276
        %2278 = vrot.lane.b32.xlu0 %v1724, 64
        %v2279 = vpop.permute.xlu0 %2278
        %2280 = vrot.lane.b32.xlu0 %v1727, 64
        %v2281 = vpop.permute.xlu0 %2280
        %2282 = vrot.lane.b32.xlu0 %v1730, 64
        %v2283 = vpop.permute.xlu0 %2282
        %2284 = vrot.lane.b32.xlu0 %v1733, 64
        %v2285 = vpop.permute.xlu0 %2284
        %2286 = vrot.lane.b32.xlu0 %v1736, 64
        %v2287 = vpop.permute.xlu0 %2286
        %2288 = vrot.lane.b32.xlu0 %v1739, 64
        %v2289 = vpop.permute.xlu0 %2288
        %2290 = vrot.lane.b32.xlu0 %v1742, 64
        %v2291 = vpop.permute.xlu0 %2290
        %2292 = vrot.lane.b32.xlu0 %v1745, 64
        %v2293 = vpop.permute.xlu0 %2292
        %2294 = vrot.lane.b32.xlu0 %v1748, 64
        %v2295 = vpop.permute.xlu0 %2294
        %v2296 = vmul.f32 %v2233, %v2008
        %v2297 = vmul.f32 %v2235, %v2009
        %v2298 = vmul.f32 %v2237, %v2010
        %v2299 = vmul.f32 %v2239, %v2011
        %v2300 = vmul.f32 %v2241, %v2012
        %v2301 = vmul.f32 %v2243, %v2013
        %v2302 = vmul.f32 %v2245, %v2014
        %v2303 = vmul.f32 %v2247, %v2015
        %v2304 = vmul.f32 %v2249, %v2016
        %v2305 = vmul.f32 %v2251, %v2017
        %v2306 = vmul.f32 %v2253, %v2018
        %v2307 = vmul.f32 %v2255, %v2019
        %v2308 = vmul.f32 %v2257, %v2020
        %v2309 = vmul.f32 %v2259, %v2021
        %v2310 = vmul.f32 %v2261, %v2022
        %v2311 = vmul.f32 %v2263, %v2023
        %v2312 = vmul.f32 %v2265, %v2024
        %v2313 = vmul.f32 %v2267, %v2025
        %v2314 = vmul.f32 %v2269, %v2026
        %v2315 = vmul.f32 %v2271, %v2027
        %v2316 = vmul.f32 %v2273, %v2028
        %v2317 = vmul.f32 %v2275, %v2029
        %v2318 = vmul.f32 %v2277, %v2030
        %v2319 = vmul.f32 %v2279, %v2031
        %v2320 = vmul.f32 %v2281, %v2032
        %v2321 = vmul.f32 %v2283, %v2033
        %v2322 = vmul.f32 %v2285, %v2034
        %v2323 = vmul.f32 %v2287, %v2035
        %v2324 = vmul.f32 %v2289, %v2036
        %v2325 = vmul.f32 %v2291, %v2037
        %v2326 = vmul.f32 %v2293, %v2038
        %v2327 = vmul.f32 %v2295, %v2039
        %v2328 = vadd.f32 %v2200, %v2296
        %v2329 = vadd.f32 %v2201, %v2297
        %v2330 = vadd.f32 %v2202, %v2298
        %v2331 = vadd.f32 %v2203, %v2299
        %v2332 = vadd.f32 %v2204, %v2300
        %v2333 = vadd.f32 %v2205, %v2301
        %v2334 = vadd.f32 %v2206, %v2302
        %v2335 = vadd.f32 %v2207, %v2303
        %v2336 = vadd.f32 %v2208, %v2304
        %v2337 = vadd.f32 %v2209, %v2305
        %v2338 = vadd.f32 %v2210, %v2306
        %v2339 = vadd.f32 %v2211, %v2307
        %v2340 = vadd.f32 %v2212, %v2308
        %v2341 = vadd.f32 %v2213, %v2309
        %v2342 = vadd.f32 %v2214, %v2310
        %v2343 = vadd.f32 %v2215, %v2311
        %v2344 = vadd.f32 %v2216, %v2312
        %v2345 = vadd.f32 %v2217, %v2313
        %v2346 = vadd.f32 %v2218, %v2314
        %v2347 = vadd.f32 %v2219, %v2315
        %v2348 = vadd.f32 %v2220, %v2316
        %v2349 = vadd.f32 %v2221, %v2317
        %v2350 = vadd.f32 %v2222, %v2318
        %v2351 = vadd.f32 %v2223, %v2319
        %v2352 = vadd.f32 %v2224, %v2320
        %v2353 = vadd.f32 %v2225, %v2321
        %v2354 = vadd.f32 %v2226, %v2322
        %v2355 = vadd.f32 %v2227, %v2323
        %v2356 = vadd.f32 %v2228, %v2324
        %v2357 = vadd.f32 %v2229, %v2325
        %v2358 = vadd.f32 %v2230, %v2326
        %v2359 = vadd.f32 %v2231, %v2327
        %v2360 = vmul.f32 %v2168, 0.088388346
        %v2361 = vmul.f32 %v2169, 0.088388346
        %v2362 = vmul.f32 %v2170, 0.088388346
        %v2363 = vmul.f32 %v2171, 0.088388346
        %v2364 = vmul.f32 %v2172, 0.088388346
        %v2365 = vmul.f32 %v2173, 0.088388346
        %v2366 = vmul.f32 %v2174, 0.088388346
        %v2367 = vmul.f32 %v2175, 0.088388346
        %v2368 = vmul.f32 %v2176, 0.088388346
        %v2369 = vmul.f32 %v2177, 0.088388346
        %v2370 = vmul.f32 %v2178, 0.088388346
        %v2371 = vmul.f32 %v2179, 0.088388346
        %v2372 = vmul.f32 %v2180, 0.088388346
        %v2373 = vmul.f32 %v2181, 0.088388346
        %v2374 = vmul.f32 %v2182, 0.088388346
        %v2375 = vmul.f32 %v2183, 0.088388346
        %v2376 = vmul.f32 %v2184, 0.088388346
        %v2377 = vmul.f32 %v2185, 0.088388346
        %v2378 = vmul.f32 %v2186, 0.088388346
        %v2379 = vmul.f32 %v2187, 0.088388346
        %v2380 = vmul.f32 %v2188, 0.088388346
        %v2381 = vmul.f32 %v2189, 0.088388346
        %v2382 = vmul.f32 %v2190, 0.088388346
        %v2383 = vmul.f32 %v2191, 0.088388346
        %v2384 = vmul.f32 %v2192, 0.088388346
        %v2385 = vmul.f32 %v2193, 0.088388346
        %v2386 = vmul.f32 %v2194, 0.088388346
        %v2387 = vmul.f32 %v2195, 0.088388346
        %v2388 = vmul.f32 %v2196, 0.088388346
        %v2389 = vmul.f32 %v2197, 0.088388346
        %v2390 = vmul.f32 %v2198, 0.088388346
        %v2391 = vmul.f32 %v2199, 0.088388346
        %2392 = vst [vmem:[%s431] sm:$0xff] %v2360
        %2393 = vst [vmem:[%s431 + $0x8] sm:$0xff] %v2361
        %2394 = vst [vmem:[%s431 + $0x10] sm:$0xff] %v2362
        %2395 = vst [vmem:[%s431 + $0x18] sm:$0xff] %v2363
        %2396 = vst [vmem:[%s431 + $0x20] sm:$0xff] %v2364
        %2397 = vst [vmem:[%s431 + $0x28] sm:$0xff] %v2365
        %2398 = vst [vmem:[%s431 + $0x30] sm:$0xff] %v2366
        %2399 = vst [vmem:[%s431 + $0x38] sm:$0xff] %v2367
        %2400 = vst [vmem:[%s431 + $0x40] sm:$0xff] %v2368
        %2401 = vst [vmem:[%s431 + $0x48] sm:$0xff] %v2369
        %2402 = vst [vmem:[%s431 + $0x50] sm:$0xff] %v2370
        %2403 = vst [vmem:[%s431 + $0x58] sm:$0xff] %v2371
        %2404 = vst [vmem:[%s431 + $0x60] sm:$0xff] %v2372
        %2405 = vst [vmem:[%s431 + $0x68] sm:$0xff] %v2373
        %2406 = vst [vmem:[%s431 + $0x70] sm:$0xff] %v2374
        %2407 = vst [vmem:[%s431 + $0x78] sm:$0xff] %v2375
        %2408 = vst [vmem:[%s431 + $0x80] sm:$0xff] %v2376
        %2409 = vst [vmem:[%s431 + $0x88] sm:$0xff] %v2377
        %2410 = vst [vmem:[%s431 + $0x90] sm:$0xff] %v2378
        %2411 = vst [vmem:[%s431 + $0x98] sm:$0xff] %v2379
        %2412 = vst [vmem:[%s431 + $0xa0] sm:$0xff] %v2380
        %2413 = vst [vmem:[%s431 + $0xa8] sm:$0xff] %v2381
        %2414 = vst [vmem:[%s431 + $0xb0] sm:$0xff] %v2382
        %2415 = vst [vmem:[%s431 + $0xb8] sm:$0xff] %v2383
        %2416 = vst [vmem:[%s431 + $0xc0] sm:$0xff] %v2384
        %2417 = vst [vmem:[%s431 + $0xc8] sm:$0xff] %v2385
        %2418 = vst [vmem:[%s431 + $0xd0] sm:$0xff] %v2386
        %2419 = vst [vmem:[%s431 + $0xd8] sm:$0xff] %v2387
        %2420 = vst [vmem:[%s431 + $0xe0] sm:$0xff] %v2388
        %2421 = vst [vmem:[%s431 + $0xe8] sm:$0xff] %v2389
        %2422 = vst [vmem:[%s431 + $0xf0] sm:$0xff] %v2390
        %2423 = vst [vmem:[%s431 + $0xf8] sm:$0xff] %v2391
        %2424 = vst [vmem:[%s438] sm:$0xff] %v2328
        %2425 = vst [vmem:[%s438 + $0x8] sm:$0xff] %v2329
        %2426 = vst [vmem:[%s438 + $0x10] sm:$0xff] %v2330
        %2427 = vst [vmem:[%s438 + $0x18] sm:$0xff] %v2331
        %2428 = vst [vmem:[%s438 + $0x20] sm:$0xff] %v2332
        %2429 = vst [vmem:[%s438 + $0x28] sm:$0xff] %v2333
        %2430 = vst [vmem:[%s438 + $0x30] sm:$0xff] %v2334
        %2431 = vst [vmem:[%s438 + $0x38] sm:$0xff] %v2335
        %2432 = vst [vmem:[%s438 + $0x40] sm:$0xff] %v2336
        %2433 = vst [vmem:[%s438 + $0x48] sm:$0xff] %v2337
        %2434 = vst [vmem:[%s438 + $0x50] sm:$0xff] %v2338
        %2435 = vst [vmem:[%s438 + $0x58] sm:$0xff] %v2339
        %2436 = vst [vmem:[%s438 + $0x60] sm:$0xff] %v2340
        %2437 = vst [vmem:[%s438 + $0x68] sm:$0xff] %v2341
        %2438 = vst [vmem:[%s438 + $0x70] sm:$0xff] %v2342
        %2439 = vst [vmem:[%s438 + $0x78] sm:$0xff] %v2343
        %2440 = vst [vmem:[%s438 + $0x80] sm:$0xff] %v2344
        %2441 = vst [vmem:[%s438 + $0x88] sm:$0xff] %v2345
        %2442 = vst [vmem:[%s438 + $0x90] sm:$0xff] %v2346
        %2443 = vst [vmem:[%s438 + $0x98] sm:$0xff] %v2347
        %2444 = vst [vmem:[%s438 + $0xa0] sm:$0xff] %v2348
        %2445 = vst [vmem:[%s438 + $0xa8] sm:$0xff] %v2349
        %2446 = vst [vmem:[%s438 + $0xb0] sm:$0xff] %v2350
        %2447 = vst [vmem:[%s438 + $0xb8] sm:$0xff] %v2351
        %2448 = vst [vmem:[%s438 + $0xc0] sm:$0xff] %v2352
        %2449 = vst [vmem:[%s438 + $0xc8] sm:$0xff] %v2353
        %2450 = vst [vmem:[%s438 + $0xd0] sm:$0xff] %v2354
        %2451 = vst [vmem:[%s438 + $0xd8] sm:$0xff] %v2355
        %2452 = vst [vmem:[%s438 + $0xe0] sm:$0xff] %v2356
        %2453 = vst [vmem:[%s438 + $0xe8] sm:$0xff] %v2357
        %2454 = vst [vmem:[%s438 + $0xf0] sm:$0xff] %v2358
        %2455 = vst [vmem:[%s438 + $0xf8] sm:$0xff] %v2359
        %2456 = vst [vmem:[%s445] sm:$0xff] %v1881
        %2457 = vst [vmem:[%s445 + $0x8] sm:$0xff] %v1884
        %2458 = vst [vmem:[%s445 + $0x10] sm:$0xff] %v1887
        %2459 = vst [vmem:[%s445 + $0x18] sm:$0xff] %v1890
        %2460 = vst [vmem:[%s445 + $0x20] sm:$0xff] %v1893
        %2461 = vst [vmem:[%s445 + $0x28] sm:$0xff] %v1896
        %2462 = vst [vmem:[%s445 + $0x30] sm:$0xff] %v1899
        %2463 = vst [vmem:[%s445 + $0x38] sm:$0xff] %v1902
        %2464 = vst [vmem:[%s445 + $0x40] sm:$0xff] %v1905
        %2465 = vst [vmem:[%s445 + $0x48] sm:$0xff] %v1908
        %2466 = vst [vmem:[%s445 + $0x50] sm:$0xff] %v1911
        %2467 = vst [vmem:[%s445 + $0x58] sm:$0xff] %v1914
        %2468 = vst [vmem:[%s445 + $0x60] sm:$0xff] %v1917
        %2469 = vst [vmem:[%s445 + $0x68] sm:$0xff] %v1920
        %2470 = vst [vmem:[%s445 + $0x70] sm:$0xff] %v1923
        %2471 = vst [vmem:[%s445 + $0x78] sm:$0xff] %v1926
        %2472 = vst [vmem:[%s445 + $0x80] sm:$0xff] %v1929
        %2473 = vst [vmem:[%s445 + $0x88] sm:$0xff] %v1932
        %2474 = vst [vmem:[%s445 + $0x90] sm:$0xff] %v1935
        %2475 = vst [vmem:[%s445 + $0x98] sm:$0xff] %v1938
        %2476 = vst [vmem:[%s445 + $0xa0] sm:$0xff] %v1941
        %2477 = vst [vmem:[%s445 + $0xa8] sm:$0xff] %v1944
        %2478 = vst [vmem:[%s445 + $0xb0] sm:$0xff] %v1947
        %2479 = vst [vmem:[%s445 + $0xb8] sm:$0xff] %v1950
        %2480 = vst [vmem:[%s445 + $0xc0] sm:$0xff] %v1953
        %2481 = vst [vmem:[%s445 + $0xc8] sm:$0xff] %v1956
        %2482 = vst [vmem:[%s445 + $0xd0] sm:$0xff] %v1959
        %2483 = vst [vmem:[%s445 + $0xd8] sm:$0xff] %v1962
        %2484 = vst [vmem:[%s445 + $0xe0] sm:$0xff] %v1965
        %2485 = vst [vmem:[%s445 + $0xe8] sm:$0xff] %v1968
        %2486 = vst [vmem:[%s445 + $0xf0] sm:$0xff] %v1971
        %2487 = vst [vmem:[%s445 + $0xf8] sm:$0xff] %v1974
        %s2488 = sand.u32 %s180, 1
        %s2489 = scalar_lea.sflag [#allocation4], %s2488
        %s2490 = sand.u32 %s180, 1
        %s2491 = smul.addr %s2490, 256
        %s2492 = scalar_lea.vmem [#allocation10], %s2491
        %s2493 = sand.u32 %s32, 1
        %s2494 = scalar_lea.sflag [#allocation12], %s2493
        %s2495 = sand.u32 %s208, 1
        %s2496 = smul.addr %s2495, 256
        %s2497 = scalar_lea.vmem [#allocation11], %s2496
        %s2498 = sand.u32 %s32, 1
        %s2499 = scalar_lea.sflag [#allocation12], %s2498
        %s2500 = sand.u32 %s236, 1
        %s2501 = smul.addr %s2500, 256
        %s2502 = scalar_lea.vmem [#allocation13], %s2501
        // Predicated region
        $region57: #{tpu_custom_call.1} parent=39 // pred_check
          %p2503 = pneg %p190
        $region58: #{tpu_custom_call.1} parent=39 // pred_check_branch
          %2505 = sbr.rel (%p2503) target = $region60
        $region59: #{tpu_custom_call.1} parent=39 // pred_region
          %s2506 = smul.u32 32, %s37
          %2508 = vsyncadd %s2489, 0
          %s2509 = smul.addr %s36, 64
          %s2510 = sadd.s32 %s2506, %s2509
          %s2511 = smul.addr %s2510, 8
          %s2512 = scalar_lea.hbm %s5, %s2511
          %s2513 = sshll.u32 %s2492, 4
          %s2514 = int_to_ptr.vmem [resolvable:$true] %s2513
          %s2515 = sshll.u32 %s2512, 4
          %s2516 = int_to_ptr.hbm [resolvable:$true] %s2515
          %2521 = dma.vmem_to_hbm [thread:$0]  %s2514, 4096, %s2516, %s2489, 128, 128, 8
        $region60: #{tpu_custom_call.1} parent=39 // pred_fallthru
          _
        // Predicated region
        $region61: #{tpu_custom_call.1} parent=39 // pred_check
          %p2522 = pneg %p218
        $region62: #{tpu_custom_call.1} parent=39 // pred_check_branch
          %2524 = sbr.rel (%p2522) target = $region64
        $region63: #{tpu_custom_call.1} parent=39 // pred_region
          %s2525 = smul.u32 32, %s37
          %2527 = vsyncadd %s2494, 0
          %s2528 = smul.addr %s36, 64
          %s2529 = sadd.s32 %s2525, %s2528
          %s2530 = smul.addr %s2529, 8
          %s2531 = scalar_lea.hbm %s6, %s2530
          %s2532 = sshll.u32 %s2497, 4
          %s2533 = int_to_ptr.vmem [resolvable:$true] %s2532
          %s2534 = sshll.u32 %s2531, 4
          %s2535 = int_to_ptr.hbm [resolvable:$true] %s2534
          %2540 = dma.vmem_to_hbm [thread:$0]  %s2533, 4096, %s2535, %s2494, 128, 128, 8
        $region64: #{tpu_custom_call.1} parent=39 // pred_fallthru
          _
        // Predicated region
        $region65: #{tpu_custom_call.1} parent=39 // pred_check
          %p2541 = pneg %p246
        $region66: #{tpu_custom_call.1} parent=39 // pred_check_branch
          %2543 = sbr.rel (%p2541) target = $region68
        $region67: #{tpu_custom_call.1} parent=39 // pred_region
          %s2544 = smul.u32 32, %s37
          %2546 = vsyncadd %s2499, 0
          %s2547 = smul.addr %s36, 64
          %s2548 = sadd.s32 %s2544, %s2547
          %s2549 = smul.addr %s2548, 8
          %s2550 = scalar_lea.hbm %s7, %s2549
          %s2551 = sshll.u32 %s2502, 4
          %s2552 = int_to_ptr.vmem [resolvable:$true] %s2551
          %s2553 = sshll.u32 %s2550, 4
          %s2554 = int_to_ptr.hbm [resolvable:$true] %s2553
          %2559 = dma.vmem_to_hbm [thread:$0]  %s2552, 4096, %s2554, %s2499, 128, 128, 8
        $region68: #{tpu_custom_call.1} parent=39 // pred_fallthru
          _
      $region40: #{tpu_custom_call.1} parent=5 // pred_fallthru
        _
      %p2560 = scmp.le.s32.totalorder 2, %s27
      // Predicated region
      $region69: #{tpu_custom_call.1} parent=5 // pred_check
        %p2561 = pneg %p2560
      $region70: #{tpu_custom_call.1} parent=5 // pred_check_branch
        %2563 = sbr.rel (%p2561) target = $region72
      $region71: #{tpu_custom_call.1} parent=5 // pred_region
        %s2564 = ssub.s32 %s27, 2
        // Predicated region
        $region73: #{tpu_custom_call.1} parent=71 // pred_check
          %p2565 = pneg %p196
        $region74: #{tpu_custom_call.1} parent=71 // pred_check_branch
          %2567 = sbr.rel (%p2565) target = $region76
        $region75: #{tpu_custom_call.1} parent=71 // pred_region
          %s2568 = sand.u32 %s181, 1
          %s2569 = scalar_lea.sflag [#allocation4], %s2568
          %s2570 = sand.u32 %s181, 1
          %s2571 = smul.addr %s2570, 256
          %s2572 = scalar_lea.vmem [#allocation10], %s2571
          %2574 = dma.done %s2569, 4096
        $region76: #{tpu_custom_call.1} parent=71 // pred_fallthru
          _
        // Predicated region
        $region77: #{tpu_custom_call.1} parent=71 // pred_check
          %p2575 = pneg %p224
        $region78: #{tpu_custom_call.1} parent=71 // pred_check_branch
          %2577 = sbr.rel (%p2575) target = $region80
        $region79: #{tpu_custom_call.1} parent=71 // pred_region
          %s2578 = sand.u32 %s33, 1
          %s2579 = scalar_lea.sflag [#allocation12], %s2578
          %s2580 = sand.u32 %s209, 1
          %s2581 = smul.addr %s2580, 256
          %s2582 = scalar_lea.vmem [#allocation11], %s2581
          %2584 = dma.done %s2579, 4096
        $region80: #{tpu_custom_call.1} parent=71 // pred_fallthru
          _
        // Predicated region
        $region81: #{tpu_custom_call.1} parent=71 // pred_check
          %p2585 = pneg %p252
        $region82: #{tpu_custom_call.1} parent=71 // pred_check_branch
          %2587 = sbr.rel (%p2585) target = $region84
        $region83: #{tpu_custom_call.1} parent=71 // pred_region
          %s2588 = sand.u32 %s33, 1
          %s2589 = scalar_lea.sflag [#allocation12], %s2588
          %s2590 = sand.u32 %s237, 1
          %s2591 = smul.addr %s2590, 256
          %s2592 = scalar_lea.vmem [#allocation13], %s2591
          %2594 = dma.done %s2589, 4096
        $region84: #{tpu_custom_call.1} parent=71 // pred_fallthru
          _
      $region72: #{tpu_custom_call.1} parent=5 // pred_fallthru
        _
    $region6: #{tpu_custom_call.1} parent=1 // loop_footer
      %s31 = sadd.s32 1, %s27
    $region7: #{tpu_custom_call.1} parent=1 // loop_footer_branch
      %26 = sbr.rel target = $region3
    $region8: #{tpu_custom_call.1} parent=1 // loop_exit
      _
    %2595 = vsyncpa [#allocation3], 1
    %s2596 = scalar_lea.sflag [#allocation3], 1
    %2597 = vsyncpa %s2596, 1
    %2598 = vsyncpa [#allocation6], 1
    %s2599 = scalar_lea.sflag [#allocation6], 1
    %2600 = vsyncpa %s2599, 1
    %2601 = vsyncpa [#allocation9], 1
    %2602 = vsyncpa [#allocation4], 1
    %s2603 = scalar_lea.sflag [#allocation4], 1
    %2604 = vsyncpa %s2603, 1
    %2605 = vsyncpa [#allocation12], 1
    %s2606 = scalar_lea.sflag [#allocation12], 1
    %2607 = vsyncpa %s2606, 1

</llo_original>
